<compile_context>
chip_gen: v5e
topology: v5e:2x2
jax: 0.10.0
libtpu: 0.0.40
codegen_flags: <defaults>
</compile_context>

<pallas_src>
import math
from functools import partial

import jax
import jax.numpy as jnp
from jax import lax
from jax.experimental import pallas as pl
from jax.experimental.pallas import tpu as pltpu


def _linformer_kernel(q_ref, k_ref, v_ref, mask_ref, e_ref, o_ref,
                      kp_ref, vp_ref, *, scale, g):
    """One (head-group, batch, q-tile) grid step.

    q_ref   : (g, Sq, D)
    k_ref   : (g, S,  D)    -- consumed only on the first q-tile
    v_ref   : (g, S,  D)
    mask_ref: (1, S)        -- lane-dense mask block
    e_ref   : (g, k_lin, S)
    o_ref   : (Sq, g*D)     -- lane-dense output slab
    kp_ref  : (g, k_lin, D) -- VMEM scratch, persists across q-tiles
    vp_ref  : (g, k_lin, D)
    """
    # Compute the low-rank projections once per (head-group, batch) and cache
    # them in VMEM scratch; every q-tile reuses them.
    @pl.when(pl.program_id(2) == 0)
    def _():
        m = mask_ref[...]                                        # (1, S)
        for i in range(g):
            # Mask the small (k_lin, S) operand instead of (S, D) K and V.
            e_m = e_ref[i] * m                                   # (k_lin, S)
            kp = jnp.dot(e_m, k_ref[i],
                         preferred_element_type=jnp.float32) * scale
            vp = jnp.dot(e_m, v_ref[i],
                         preferred_element_type=jnp.float32)
            kp_ref[i] = kp.astype(kp_ref.dtype)
            vp_ref[i] = vp.astype(vp_ref.dtype)

    outs = []
    for i in range(g):
        q = q_ref[i]                                             # (Sq, D)
        # Q @ k_projᵀ without materializing a transpose: contract last dims.
        logits = lax.dot_general(
            q, kp_ref[i],
            dimension_numbers=(((1,), (1,)), ((), ())),
            preferred_element_type=jnp.float32)                  # (Sq, k_lin) f32
        l_max = jnp.max(logits, axis=-1, keepdims=True)
        p = jnp.exp(logits - l_max)
        denom = jnp.sum(p, axis=-1, keepdims=True)
        attn = p * pl.reciprocal(denom, approx=True)
        out = jnp.dot(attn.astype(vp_ref.dtype), vp_ref[i],
                      preferred_element_type=jnp.float32)        # (Sq, D)
        outs.append(out)

    # Single lane-dense store of all g heads for this q-tile.
    o_ref[...] = jnp.concatenate(outs, axis=-1).astype(o_ref.dtype)


def _pick_q_tile(seq_len):
    for t in (1024, 512, 256, 128):
        if seq_len % t == 0:
            return t
    return seq_len


def linformer_attention(Q, K, V, mask, E):
    """Q, K, V: [B, H, S, D]; mask: [B, S]; E: [H, k_lin, S] -> [B, H, S, D]."""
    B, H, S, D = Q.shape
    k_lin = E.shape[1]

    # Pack g heads per grid step so the output block is lane-dense (g*D lanes).
    g = max(1, 128 // D) if D < 128 else 1
    g = min(g, H)
    while H % g != 0:
        g -= 1

    sq_tile = _pick_q_tile(S)
    num_q_tiles = S // sq_tile

    mask2 = mask.reshape(B, 1, S)            # lane-dense (1, S) mask blocks
    scale = 1.0 / math.sqrt(D)

    sq = pl.Squeezed()
    kernel = partial(_linformer_kernel, scale=scale, g=g)

    # Note: for extremely long S one could additionally tile the E-projection
    # over the KV sequence axis with accumulation to shrink the K/V blocks.
    grid_spec = pltpu.PrefetchScalarGridSpec(
        num_scalar_prefetch=0,
        # Head-group outermost so E (shared across the batch) is fetched once
        # per head group; q-tile axis innermost and sequential ("arbitrary").
        grid=(H // g, B, num_q_tiles),
        in_specs=[
            pl.BlockSpec((sq, g, sq_tile, D), lambda h, b, t: (b, h, t, 0)),  # Q
            pl.BlockSpec((sq, g, S, D),       lambda h, b, t: (b, h, 0, 0)),  # K
            pl.BlockSpec((sq, g, S, D),       lambda h, b, t: (b, h, 0, 0)),  # V
            pl.BlockSpec((sq, 1, S),          lambda h, b, t: (b, 0, 0)),     # mask
            pl.BlockSpec((g, k_lin, S),       lambda h, b, t: (h, 0, 0)),     # E
        ],
        out_specs=pl.BlockSpec((sq, sq, sq_tile, g * D),
                               lambda h, b, t: (b, h, t, 0)),
        scratch_shapes=[
            pltpu.VMEM((g, k_lin, D), Q.dtype),   # cached k_proj
            pltpu.VMEM((g, k_lin, D), Q.dtype),   # cached v_proj
        ],
    )

    esz = jnp.dtype(Q.dtype).itemsize
    block_bytes = (g * sq_tile * D          # Q tile
                   + 2 * g * S * D          # K, V
                   + S                      # mask
                   + g * k_lin * S          # E
                   + sq_tile * g * D) * esz # O tile
    # Raise above the 32 MiB scoped default, stay under v7x's 64 MiB physical.
    vmem_limit = min(max(int(3 * block_bytes), 32 * 1024 * 1024),
                     56 * 1024 * 1024)

    out = pl.pallas_call(
        kernel,
        out_shape=jax.ShapeDtypeStruct((B, H // g, S, g * D), Q.dtype),
        grid_spec=grid_spec,
        compiler_params=pltpu.CompilerParams(
            dimension_semantics=("parallel", "parallel", "arbitrary"),
            vmem_limit_bytes=vmem_limit,
        ),
    )(Q, K, V, mask2, E)

    if g > 1:
        # Undo the head packing: [B, H//g, S, g*D] -> [B, H, S, D].
        out = (out.reshape(B, H // g, S, g, D)
                  .transpose(0, 1, 3, 2, 4)
                  .reshape(B, H, S, D))
    return out


def linformer_attention_ref(Q, K, V, mask, E):
    """Pure-JAX reference mirroring the PyTorch forward exactly."""
    D = Q.shape[-1]
    m = mask[:, None, :, None]                       # [B,1,S,1]
    Kp = jnp.einsum("hks,bhsd->bhkd", E, K * m)      # [B,H,k,D]
    Vp = jnp.einsum("hks,bhsd->bhkd", E, V * m)      # [B,H,k,D]
    dot = jnp.einsum("bhsd,bhkd->bhsk", Q, Kp) / math.sqrt(D)
    attn = jax.nn.softmax(dot, axis=-1)
    return jnp.einsum("bhsk,bhkd->bhsd", attn, Vp)


if __name__ == "__main__":
    # Config implied by the module: num_head, head_dim, linformer_k, max_seq_len.
    B, H, S, D, K_LIN = 2, 4, 16, 32, 8

    key = jax.random.PRNGKey(0)
    kq, kk, kv, km, ke = jax.random.split(key, 5)

    Q = jax.random.normal(kq, (B, H, S, D), dtype=jnp.float32)
    K = jax.random.normal(kk, (B, H, S, D), dtype=jnp.float32)
    V = jax.random.normal(kv, (B, H, S, D), dtype=jnp.float32)
    # Binary mask [B, S] (1 = keep, 0 = pad), deterministic.
    mask = (jax.random.uniform(km, (B, S)) > 0.2).astype(jnp.float32)
    # Projection matrix E ~ randn(H, k, S) / sqrt(k), deterministic in-script.
    E = jax.random.normal(ke, (H, K_LIN, S), dtype=jnp.float32) / math.sqrt(K_LIN)

    out = jax.block_until_ready(linformer_attention(Q, K, V, mask, E))
    ref = linformer_attention_ref(Q, K, V, mask, E)

    assert out.shape == (B, H, S, D)
    # approx=True softmax reciprocal -> slightly looser tolerance vs f32 reference.
    assert jnp.allclose(out, ref, atol=1e-2, rtol=1e-2), "mismatch vs reference"

    print("KERNEL_OK")
</pallas_src>

<mosaic_0001>
module attributes {stable_mosaic.version = 11 : i64} {
  func.func @_linformer_kernel(%arg0: i32, %arg1: i32, %arg2: i32, %arg3: memref<1x4x16x32xf32, #tpu.memory_space<vmem>>, %arg4: memref<1x4x16x32xf32, #tpu.memory_space<vmem>>, %arg5: memref<1x4x16x32xf32, #tpu.memory_space<vmem>>, %arg6: memref<1x1x16xf32, #tpu.memory_space<vmem>>, %arg7: memref<4x8x16xf32, #tpu.memory_space<vmem>>, %arg8: memref<1x1x16x128xf32, #tpu.memory_space<vmem>>, %arg9: memref<4x8x32xf32, #tpu.memory_space<vmem>>, %arg10: memref<4x8x32xf32, #tpu.memory_space<vmem>>) attributes {dimension_semantics = [#tpu.dimension_semantics<parallel>, #tpu.dimension_semantics<parallel>, #tpu.dimension_semantics<arbitrary>], iteration_bounds = array<i64: 1, 2, 1>, scalar_prefetch = 0 : i64, scratch_operands = 2 : i64, tpu.core_type = #tpu.core_type<tc>, window_params = [{transform_indices = @transform_0, window_bounds = array<i64: 1, 4, 16, 32>}, {transform_indices = @transform_1, window_bounds = array<i64: 1, 4, 16, 32>}, {transform_indices = @transform_2, window_bounds = array<i64: 1, 4, 16, 32>}, {transform_indices = @transform_3, window_bounds = array<i64: 1, 1, 16>}, {transform_indices = @transform_4, window_bounds = array<i64: 4, 8, 16>}, {transform_indices = @transform_5, window_bounds = array<i64: 1, 1, 16, 128>}]} {
    %c0_i32 = arith.constant 0 : i32
    %0 = arith.cmpi eq, %arg2, %c0_i32 : i32
    %1 = arith.extui %0 : i1 to i32
    %c0_i32_0 = arith.constant 0 : i32
    %2 = arith.cmpi ne, %1, %c0_i32_0 : i32
    scf.if %2 {
      %c0_56 = arith.constant 0 : index
      %c0_57 = arith.constant 0 : index
      %c0_58 = arith.constant 0 : index
      %79 = vector.load %arg6[%c0_56, %c0_57, %c0_58] : memref<1x1x16xf32, #tpu.memory_space<vmem>>, vector<1x1x16xf32>
      %80 = vector.shape_cast %79 : vector<1x1x16xf32> to vector<1x16xf32>
      %c0_59 = arith.constant 0 : index
      %c0_60 = arith.constant 0 : index
      %c0_61 = arith.constant 0 : index
      %81 = vector.load %arg7[%c0_59, %c0_60, %c0_61] : memref<4x8x16xf32, #tpu.memory_space<vmem>>, vector<1x8x16xf32>
      %82 = vector.shape_cast %81 : vector<1x8x16xf32> to vector<8x16xf32>
      %83 = vector.broadcast %80 : vector<1x16xf32> to vector<8x16xf32>
      %84 = arith.mulf %82, %83 : vector<8x16xf32>
      %c0_62 = arith.constant 0 : index
      %c0_63 = arith.constant 0 : index
      %c0_64 = arith.constant 0 : index
      %c0_65 = arith.constant 0 : index
      %85 = vector.load %arg4[%c0_62, %c0_63, %c0_64, %c0_65] : memref<1x4x16x32xf32, #tpu.memory_space<vmem>>, vector<1x1x16x32xf32>
      %86 = vector.shape_cast %85 : vector<1x1x16x32xf32> to vector<16x32xf32>
      %cst_66 = arith.constant dense<0.000000e+00> : vector<8x32xf32>
      %87 = tpu.matmul %84, %86, %cst_66 {dimension_numbers = #tpu.dot_dimension_numbers<[1], [0], [0], [1], [0, 0, 1, 1], [], []>} : vector<8x16xf32>, vector<16x32xf32>, vector<8x32xf32> -> vector<8x32xf32>
      %cst_67 = arith.constant 0.176776692 : f32
      %88 = vector.broadcast %cst_67 : f32 to vector<8x32xf32>
      %89 = arith.mulf %87, %88 : vector<8x32xf32>
      %c0_68 = arith.constant 0 : index
      %c0_69 = arith.constant 0 : index
      %c0_70 = arith.constant 0 : index
      %c0_71 = arith.constant 0 : index
      %90 = vector.load %arg5[%c0_68, %c0_69, %c0_70, %c0_71] : memref<1x4x16x32xf32, #tpu.memory_space<vmem>>, vector<1x1x16x32xf32>
      %91 = vector.shape_cast %90 : vector<1x1x16x32xf32> to vector<16x32xf32>
      %cst_72 = arith.constant dense<0.000000e+00> : vector<8x32xf32>
      %92 = tpu.matmul %84, %91, %cst_72 {dimension_numbers = #tpu.dot_dimension_numbers<[1], [0], [0], [1], [0, 0, 1, 1], [], []>} : vector<8x16xf32>, vector<16x32xf32>, vector<8x32xf32> -> vector<8x32xf32>
      %c0_73 = arith.constant 0 : index
      %c0_74 = arith.constant 0 : index
      %c0_75 = arith.constant 0 : index
      %93 = vector.load %arg9[%c0_73, %c0_74, %c0_75] : memref<4x8x32xf32, #tpu.memory_space<vmem>>, vector<1x8x32xf32>
      %94 = vector.shape_cast %93 : vector<1x8x32xf32> to vector<8x32xf32>
      %95 = vector.shape_cast %89 : vector<8x32xf32> to vector<1x8x32xf32>
      tpu.vector_store %arg9[%c0_73, %c0_74, %c0_75], %95 {strides = array<i32>} : memref<4x8x32xf32, #tpu.memory_space<vmem>>, vector<1x8x32xf32>,
      %c0_76 = arith.constant 0 : index
      %c0_77 = arith.constant 0 : index
      %c0_78 = arith.constant 0 : index
      %96 = vector.load %arg10[%c0_76, %c0_77, %c0_78] : memref<4x8x32xf32, #tpu.memory_space<vmem>>, vector<1x8x32xf32>
      %97 = vector.shape_cast %96 : vector<1x8x32xf32> to vector<8x32xf32>
      %98 = vector.shape_cast %92 : vector<8x32xf32> to vector<1x8x32xf32>
      tpu.vector_store %arg10[%c0_76, %c0_77, %c0_78], %98 {strides = array<i32>} : memref<4x8x32xf32, #tpu.memory_space<vmem>>, vector<1x8x32xf32>,
      %c1_79 = arith.constant 1 : index
      %c0_80 = arith.constant 0 : index
      %c0_81 = arith.constant 0 : index
      %99 = vector.load %arg7[%c1_79, %c0_80, %c0_81] : memref<4x8x16xf32, #tpu.memory_space<vmem>>, vector<1x8x16xf32>
      %100 = vector.shape_cast %99 : vector<1x8x16xf32> to vector<8x16xf32>
      %101 = vector.broadcast %80 : vector<1x16xf32> to vector<8x16xf32>
      %102 = arith.mulf %100, %101 : vector<8x16xf32>
      %c0_82 = arith.constant 0 : index
      %c1_83 = arith.constant 1 : index
      %c0_84 = arith.constant 0 : index
      %c0_85 = arith.constant 0 : index
      %103 = vector.load %arg4[%c0_82, %c1_83, %c0_84, %c0_85] : memref<1x4x16x32xf32, #tpu.memory_space<vmem>>, vector<1x1x16x32xf32>
      %104 = vector.shape_cast %103 : vector<1x1x16x32xf32> to vector<16x32xf32>
      %cst_86 = arith.constant dense<0.000000e+00> : vector<8x32xf32>
      %105 = tpu.matmul %102, %104, %cst_86 {dimension_numbers = #tpu.dot_dimension_numbers<[1], [0], [0], [1], [0, 0, 1, 1], [], []>} : vector<8x16xf32>, vector<16x32xf32>, vector<8x32xf32> -> vector<8x32xf32>
      %cst_87 = arith.constant 0.176776692 : f32
      %106 = vector.broadcast %cst_87 : f32 to vector<8x32xf32>
      %107 = arith.mulf %105, %106 : vector<8x32xf32>
      %c0_88 = arith.constant 0 : index
      %c1_89 = arith.constant 1 : index
      %c0_90 = arith.constant 0 : index
      %c0_91 = arith.constant 0 : index
      %108 = vector.load %arg5[%c0_88, %c1_89, %c0_90, %c0_91] : memref<1x4x16x32xf32, #tpu.memory_space<vmem>>, vector<1x1x16x32xf32>
      %109 = vector.shape_cast %108 : vector<1x1x16x32xf32> to vector<16x32xf32>
      %cst_92 = arith.constant dense<0.000000e+00> : vector<8x32xf32>
      %110 = tpu.matmul %102, %109, %cst_92 {dimension_numbers = #tpu.dot_dimension_numbers<[1], [0], [0], [1], [0, 0, 1, 1], [], []>} : vector<8x16xf32>, vector<16x32xf32>, vector<8x32xf32> -> vector<8x32xf32>
      %c1_93 = arith.constant 1 : index
      %c0_94 = arith.constant 0 : index
      %c0_95 = arith.constant 0 : index
      %111 = vector.load %arg9[%c1_93, %c0_94, %c0_95] : memref<4x8x32xf32, #tpu.memory_space<vmem>>, vector<1x8x32xf32>
      %112 = vector.shape_cast %111 : vector<1x8x32xf32> to vector<8x32xf32>
      %113 = vector.shape_cast %107 : vector<8x32xf32> to vector<1x8x32xf32>
      tpu.vector_store %arg9[%c1_93, %c0_94, %c0_95], %113 {strides = array<i32>} : memref<4x8x32xf32, #tpu.memory_space<vmem>>, vector<1x8x32xf32>,
      %c1_96 = arith.constant 1 : index
      %c0_97 = arith.constant 0 : index
      %c0_98 = arith.constant 0 : index
      %114 = vector.load %arg10[%c1_96, %c0_97, %c0_98] : memref<4x8x32xf32, #tpu.memory_space<vmem>>, vector<1x8x32xf32>
      %115 = vector.shape_cast %114 : vector<1x8x32xf32> to vector<8x32xf32>
      %116 = vector.shape_cast %110 : vector<8x32xf32> to vector<1x8x32xf32>
      tpu.vector_store %arg10[%c1_96, %c0_97, %c0_98], %116 {strides = array<i32>} : memref<4x8x32xf32, #tpu.memory_space<vmem>>, vector<1x8x32xf32>,
      %c2_99 = arith.constant 2 : index
      %c0_100 = arith.constant 0 : index
      %c0_101 = arith.constant 0 : index
      %117 = vector.load %arg7[%c2_99, %c0_100, %c0_101] : memref<4x8x16xf32, #tpu.memory_space<vmem>>, vector<1x8x16xf32>
      %118 = vector.shape_cast %117 : vector<1x8x16xf32> to vector<8x16xf32>
      %119 = vector.broadcast %80 : vector<1x16xf32> to vector<8x16xf32>
      %120 = arith.mulf %118, %119 : vector<8x16xf32>
      %c0_102 = arith.constant 0 : index
      %c2_103 = arith.constant 2 : index
      %c0_104 = arith.constant 0 : index
      %c0_105 = arith.constant 0 : index
      %121 = vector.load %arg4[%c0_102, %c2_103, %c0_104, %c0_105] : memref<1x4x16x32xf32, #tpu.memory_space<vmem>>, vector<1x1x16x32xf32>
      %122 = vector.shape_cast %121 : vector<1x1x16x32xf32> to vector<16x32xf32>
      %cst_106 = arith.constant dense<0.000000e+00> : vector<8x32xf32>
      %123 = tpu.matmul %120, %122, %cst_106 {dimension_numbers = #tpu.dot_dimension_numbers<[1], [0], [0], [1], [0, 0, 1, 1], [], []>} : vector<8x16xf32>, vector<16x32xf32>, vector<8x32xf32> -> vector<8x32xf32>
      %cst_107 = arith.constant 0.176776692 : f32
      %124 = vector.broadcast %cst_107 : f32 to vector<8x32xf32>
      %125 = arith.mulf %123, %124 : vector<8x32xf32>
      %c0_108 = arith.constant 0 : index
      %c2_109 = arith.constant 2 : index
      %c0_110 = arith.constant 0 : index
      %c0_111 = arith.constant 0 : index
      %126 = vector.load %arg5[%c0_108, %c2_109, %c0_110, %c0_111] : memref<1x4x16x32xf32, #tpu.memory_space<vmem>>, vector<1x1x16x32xf32>
      %127 = vector.shape_cast %126 : vector<1x1x16x32xf32> to vector<16x32xf32>
      %cst_112 = arith.constant dense<0.000000e+00> : vector<8x32xf32>
      %128 = tpu.matmul %120, %127, %cst_112 {dimension_numbers = #tpu.dot_dimension_numbers<[1], [0], [0], [1], [0, 0, 1, 1], [], []>} : vector<8x16xf32>, vector<16x32xf32>, vector<8x32xf32> -> vector<8x32xf32>
      %c2_113 = arith.constant 2 : index
      %c0_114 = arith.constant 0 : index
      %c0_115 = arith.constant 0 : index
      %129 = vector.load %arg9[%c2_113, %c0_114, %c0_115] : memref<4x8x32xf32, #tpu.memory_space<vmem>>, vector<1x8x32xf32>
      %130 = vector.shape_cast %129 : vector<1x8x32xf32> to vector<8x32xf32>
      %131 = vector.shape_cast %125 : vector<8x32xf32> to vector<1x8x32xf32>
      tpu.vector_store %arg9[%c2_113, %c0_114, %c0_115], %131 {strides = array<i32>} : memref<4x8x32xf32, #tpu.memory_space<vmem>>, vector<1x8x32xf32>,
      %c2_116 = arith.constant 2 : index
      %c0_117 = arith.constant 0 : index
      %c0_118 = arith.constant 0 : index
      %132 = vector.load %arg10[%c2_116, %c0_117, %c0_118] : memref<4x8x32xf32, #tpu.memory_space<vmem>>, vector<1x8x32xf32>
      %133 = vector.shape_cast %132 : vector<1x8x32xf32> to vector<8x32xf32>
      %134 = vector.shape_cast %128 : vector<8x32xf32> to vector<1x8x32xf32>
      tpu.vector_store %arg10[%c2_116, %c0_117, %c0_118], %134 {strides = array<i32>} : memref<4x8x32xf32, #tpu.memory_space<vmem>>, vector<1x8x32xf32>,
      %c3_119 = arith.constant 3 : index
      %c0_120 = arith.constant 0 : index
      %c0_121 = arith.constant 0 : index
      %135 = vector.load %arg7[%c3_119, %c0_120, %c0_121] : memref<4x8x16xf32, #tpu.memory_space<vmem>>, vector<1x8x16xf32>
      %136 = vector.shape_cast %135 : vector<1x8x16xf32> to vector<8x16xf32>
      %137 = vector.broadcast %80 : vector<1x16xf32> to vector<8x16xf32>
      %138 = arith.mulf %136, %137 : vector<8x16xf32>
      %c0_122 = arith.constant 0 : index
      %c3_123 = arith.constant 3 : index
      %c0_124 = arith.constant 0 : index
      %c0_125 = arith.constant 0 : index
      %139 = vector.load %arg4[%c0_122, %c3_123, %c0_124, %c0_125] : memref<1x4x16x32xf32, #tpu.memory_space<vmem>>, vector<1x1x16x32xf32>
      %140 = vector.shape_cast %139 : vector<1x1x16x32xf32> to vector<16x32xf32>
      %cst_126 = arith.constant dense<0.000000e+00> : vector<8x32xf32>
      %141 = tpu.matmul %138, %140, %cst_126 {dimension_numbers = #tpu.dot_dimension_numbers<[1], [0], [0], [1], [0, 0, 1, 1], [], []>} : vector<8x16xf32>, vector<16x32xf32>, vector<8x32xf32> -> vector<8x32xf32>
      %cst_127 = arith.constant 0.176776692 : f32
      %142 = vector.broadcast %cst_127 : f32 to vector<8x32xf32>
      %143 = arith.mulf %141, %142 : vector<8x32xf32>
      %c0_128 = arith.constant 0 : index
      %c3_129 = arith.constant 3 : index
      %c0_130 = arith.constant 0 : index
      %c0_131 = arith.constant 0 : index
      %144 = vector.load %arg5[%c0_128, %c3_129, %c0_130, %c0_131] : memref<1x4x16x32xf32, #tpu.memory_space<vmem>>, vector<1x1x16x32xf32>
      %145 = vector.shape_cast %144 : vector<1x1x16x32xf32> to vector<16x32xf32>
      %cst_132 = arith.constant dense<0.000000e+00> : vector<8x32xf32>
      %146 = tpu.matmul %138, %145, %cst_132 {dimension_numbers = #tpu.dot_dimension_numbers<[1], [0], [0], [1], [0, 0, 1, 1], [], []>} : vector<8x16xf32>, vector<16x32xf32>, vector<8x32xf32> -> vector<8x32xf32>
      %c3_133 = arith.constant 3 : index
      %c0_134 = arith.constant 0 : index
      %c0_135 = arith.constant 0 : index
      %147 = vector.load %arg9[%c3_133, %c0_134, %c0_135] : memref<4x8x32xf32, #tpu.memory_space<vmem>>, vector<1x8x32xf32>
      %148 = vector.shape_cast %147 : vector<1x8x32xf32> to vector<8x32xf32>
      %149 = vector.shape_cast %143 : vector<8x32xf32> to vector<1x8x32xf32>
      tpu.vector_store %arg9[%c3_133, %c0_134, %c0_135], %149 {strides = array<i32>} : memref<4x8x32xf32, #tpu.memory_space<vmem>>, vector<1x8x32xf32>,
      %c3_136 = arith.constant 3 : index
      %c0_137 = arith.constant 0 : index
      %c0_138 = arith.constant 0 : index
      %150 = vector.load %arg10[%c3_136, %c0_137, %c0_138] : memref<4x8x32xf32, #tpu.memory_space<vmem>>, vector<1x8x32xf32>
      %151 = vector.shape_cast %150 : vector<1x8x32xf32> to vector<8x32xf32>
      %152 = vector.shape_cast %146 : vector<8x32xf32> to vector<1x8x32xf32>
      tpu.vector_store %arg10[%c3_136, %c0_137, %c0_138], %152 {strides = array<i32>} : memref<4x8x32xf32, #tpu.memory_space<vmem>>, vector<1x8x32xf32>,
    } else {
    }
    %c0 = arith.constant 0 : index
    %c0_1 = arith.constant 0 : index
    %c0_2 = arith.constant 0 : index
    %c0_3 = arith.constant 0 : index
    %3 = vector.load %arg3[%c0, %c0_1, %c0_2, %c0_3] : memref<1x4x16x32xf32, #tpu.memory_space<vmem>>, vector<1x1x16x32xf32>
    %4 = vector.shape_cast %3 : vector<1x1x16x32xf32> to vector<16x32xf32>
    %c0_4 = arith.constant 0 : index
    %c0_5 = arith.constant 0 : index
    %c0_6 = arith.constant 0 : index
    %5 = vector.load %arg9[%c0_4, %c0_5, %c0_6] : memref<4x8x32xf32, #tpu.memory_space<vmem>>, vector<1x8x32xf32>
    %6 = vector.shape_cast %5 : vector<1x8x32xf32> to vector<8x32xf32>
    %cst = arith.constant dense<0.000000e+00> : vector<16x8xf32>
    %7 = tpu.matmul %4, %6, %cst {dimension_numbers = #tpu.dot_dimension_numbers<[1], [1], [0], [0], [0, 0, 1, 0], [], []>} : vector<16x32xf32>, vector<8x32xf32>, vector<16x8xf32> -> vector<16x8xf32>
    %cst_7 = arith.constant dense<0xFF800000> : vector<16xf32>
    %8 = vector.multi_reduction <maximumf>, %7, %cst_7 [1] : vector<16x8xf32> to vector<16xf32>
    %9 = vector.shape_cast %8 : vector<16xf32> to vector<16x1xf32>
    %10 = vector.broadcast %9 : vector<16x1xf32> to vector<16x8xf32>
    %11 = arith.subf %7, %10 : vector<16x8xf32>
    %12 = math.exp %11 : vector<16x8xf32>
    %cst_8 = arith.constant dense<0.000000e+00> : vector<16xf32>
    %13 = vector.multi_reduction <add>, %12, %cst_8 [1] : vector<16x8xf32> to vector<16xf32>
    %14 = vector.shape_cast %13 : vector<16xf32> to vector<16x1xf32>
    %15 = tpu.reciprocal %14 {approx = true} : vector<16x1xf32> -> vector<16x1xf32>
    %16 = vector.broadcast %15 : vector<16x1xf32> to vector<16x8xf32>
    %17 = arith.mulf %12, %16 : vector<16x8xf32>
    %c0_9 = arith.constant 0 : index
    %c0_10 = arith.constant 0 : index
    %c0_11 = arith.constant 0 : index
    %18 = vector.load %arg10[%c0_9, %c0_10, %c0_11] : memref<4x8x32xf32, #tpu.memory_space<vmem>>, vector<1x8x32xf32>
    %19 = vector.shape_cast %18 : vector<1x8x32xf32> to vector<8x32xf32>
    %cst_12 = arith.constant dense<0.000000e+00> : vector<16x32xf32>
    %20 = tpu.matmul %17, %19, %cst_12 {dimension_numbers = #tpu.dot_dimension_numbers<[1], [0], [0], [1], [0, 0, 1, 1], [], []>} : vector<16x8xf32>, vector<8x32xf32>, vector<16x32xf32> -> vector<16x32xf32>
    %c0_13 = arith.constant 0 : index
    %c1 = arith.constant 1 : index
    %c0_14 = arith.constant 0 : index
    %c0_15 = arith.constant 0 : index
    %21 = vector.load %arg3[%c0_13, %c1, %c0_14, %c0_15] : memref<1x4x16x32xf32, #tpu.memory_space<vmem>>, vector<1x1x16x32xf32>
    %22 = vector.shape_cast %21 : vector<1x1x16x32xf32> to vector<16x32xf32>
    %c1_16 = arith.constant 1 : index
    %c0_17 = arith.constant 0 : index
    %c0_18 = arith.constant 0 : index
    %23 = vector.load %arg9[%c1_16, %c0_17, %c0_18] : memref<4x8x32xf32, #tpu.memory_space<vmem>>, vector<1x8x32xf32>
    %24 = vector.shape_cast %23 : vector<1x8x32xf32> to vector<8x32xf32>
    %cst_19 = arith.constant dense<0.000000e+00> : vector<16x8xf32>
    %25 = tpu.matmul %22, %24, %cst_19 {dimension_numbers = #tpu.dot_dimension_numbers<[1], [1], [0], [0], [0, 0, 1, 0], [], []>} : vector<16x32xf32>, vector<8x32xf32>, vector<16x8xf32> -> vector<16x8xf32>
    %cst_20 = arith.constant dense<0xFF800000> : vector<16xf32>
    %26 = vector.multi_reduction <maximumf>, %25, %cst_20 [1] : vector<16x8xf32> to vector<16xf32>
    %27 = vector.shape_cast %26 : vector<16xf32> to vector<16x1xf32>
    %28 = vector.broadcast %27 : vector<16x1xf32> to vector<16x8xf32>
    %29 = arith.subf %25, %28 : vector<16x8xf32>
    %30 = math.exp %29 : vector<16x8xf32>
    %cst_21 = arith.constant dense<0.000000e+00> : vector<16xf32>
    %31 = vector.multi_reduction <add>, %30, %cst_21 [1] : vector<16x8xf32> to vector<16xf32>
    %32 = vector.shape_cast %31 : vector<16xf32> to vector<16x1xf32>
    %33 = tpu.reciprocal %32 {approx = true} : vector<16x1xf32> -> vector<16x1xf32>
    %34 = vector.broadcast %33 : vector<16x1xf32> to vector<16x8xf32>
    %35 = arith.mulf %30, %34 : vector<16x8xf32>
    %c1_22 = arith.constant 1 : index
    %c0_23 = arith.constant 0 : index
    %c0_24 = arith.constant 0 : index
    %36 = vector.load %arg10[%c1_22, %c0_23, %c0_24] : memref<4x8x32xf32, #tpu.memory_space<vmem>>, vector<1x8x32xf32>
    %37 = vector.shape_cast %36 : vector<1x8x32xf32> to vector<8x32xf32>
    %cst_25 = arith.constant dense<0.000000e+00> : vector<16x32xf32>
    %38 = tpu.matmul %35, %37, %cst_25 {dimension_numbers = #tpu.dot_dimension_numbers<[1], [0], [0], [1], [0, 0, 1, 1], [], []>} : vector<16x8xf32>, vector<8x32xf32>, vector<16x32xf32> -> vector<16x32xf32>
    %c0_26 = arith.constant 0 : index
    %c2 = arith.constant 2 : index
    %c0_27 = arith.constant 0 : index
    %c0_28 = arith.constant 0 : index
    %39 = vector.load %arg3[%c0_26, %c2, %c0_27, %c0_28] : memref<1x4x16x32xf32, #tpu.memory_space<vmem>>, vector<1x1x16x32xf32>
    %40 = vector.shape_cast %39 : vector<1x1x16x32xf32> to vector<16x32xf32>
    %c2_29 = arith.constant 2 : index
    %c0_30 = arith.constant 0 : index
    %c0_31 = arith.constant 0 : index
    %41 = vector.load %arg9[%c2_29, %c0_30, %c0_31] : memref<4x8x32xf32, #tpu.memory_space<vmem>>, vector<1x8x32xf32>
    %42 = vector.shape_cast %41 : vector<1x8x32xf32> to vector<8x32xf32>
    %cst_32 = arith.constant dense<0.000000e+00> : vector<16x8xf32>
    %43 = tpu.matmul %40, %42, %cst_32 {dimension_numbers = #tpu.dot_dimension_numbers<[1], [1], [0], [0], [0, 0, 1, 0], [], []>} : vector<16x32xf32>, vector<8x32xf32>, vector<16x8xf32> -> vector<16x8xf32>
    %cst_33 = arith.constant dense<0xFF800000> : vector<16xf32>
    %44 = vector.multi_reduction <maximumf>, %43, %cst_33 [1] : vector<16x8xf32> to vector<16xf32>
    %45 = vector.shape_cast %44 : vector<16xf32> to vector<16x1xf32>
    %46 = vector.broadcast %45 : vector<16x1xf32> to vector<16x8xf32>
    %47 = arith.subf %43, %46 : vector<16x8xf32>
    %48 = math.exp %47 : vector<16x8xf32>
    %cst_34 = arith.constant dense<0.000000e+00> : vector<16xf32>
    %49 = vector.multi_reduction <add>, %48, %cst_34 [1] : vector<16x8xf32> to vector<16xf32>
    %50 = vector.shape_cast %49 : vector<16xf32> to vector<16x1xf32>
    %51 = tpu.reciprocal %50 {approx = true} : vector<16x1xf32> -> vector<16x1xf32>
    %52 = vector.broadcast %51 : vector<16x1xf32> to vector<16x8xf32>
    %53 = arith.mulf %48, %52 : vector<16x8xf32>
    %c2_35 = arith.constant 2 : index
    %c0_36 = arith.constant 0 : index
    %c0_37 = arith.constant 0 : index
    %54 = vector.load %arg10[%c2_35, %c0_36, %c0_37] : memref<4x8x32xf32, #tpu.memory_space<vmem>>, vector<1x8x32xf32>
    %55 = vector.shape_cast %54 : vector<1x8x32xf32> to vector<8x32xf32>
    %cst_38 = arith.constant dense<0.000000e+00> : vector<16x32xf32>
    %56 = tpu.matmul %53, %55, %cst_38 {dimension_numbers = #tpu.dot_dimension_numbers<[1], [0], [0], [1], [0, 0, 1, 1], [], []>} : vector<16x8xf32>, vector<8x32xf32>, vector<16x32xf32> -> vector<16x32xf32>
    %c0_39 = arith.constant 0 : index
    %c3 = arith.constant 3 : index
    %c0_40 = arith.constant 0 : index
    %c0_41 = arith.constant 0 : index
    %57 = vector.load %arg3[%c0_39, %c3, %c0_40, %c0_41] : memref<1x4x16x32xf32, #tpu.memory_space<vmem>>, vector<1x1x16x32xf32>
    %58 = vector.shape_cast %57 : vector<1x1x16x32xf32> to vector<16x32xf32>
    %c3_42 = arith.constant 3 : index
    %c0_43 = arith.constant 0 : index
    %c0_44 = arith.constant 0 : index
    %59 = vector.load %arg9[%c3_42, %c0_43, %c0_44] : memref<4x8x32xf32, #tpu.memory_space<vmem>>, vector<1x8x32xf32>
    %60 = vector.shape_cast %59 : vector<1x8x32xf32> to vector<8x32xf32>
    %cst_45 = arith.constant dense<0.000000e+00> : vector<16x8xf32>
    %61 = tpu.matmul %58, %60, %cst_45 {dimension_numbers = #tpu.dot_dimension_numbers<[1], [1], [0], [0], [0, 0, 1, 0], [], []>} : vector<16x32xf32>, vector<8x32xf32>, vector<16x8xf32> -> vector<16x8xf32>
    %cst_46 = arith.constant dense<0xFF800000> : vector<16xf32>
    %62 = vector.multi_reduction <maximumf>, %61, %cst_46 [1] : vector<16x8xf32> to vector<16xf32>
    %63 = vector.shape_cast %62 : vector<16xf32> to vector<16x1xf32>
    %64 = vector.broadcast %63 : vector<16x1xf32> to vector<16x8xf32>
    %65 = arith.subf %61, %64 : vector<16x8xf32>
    %66 = math.exp %65 : vector<16x8xf32>
    %cst_47 = arith.constant dense<0.000000e+00> : vector<16xf32>
    %67 = vector.multi_reduction <add>, %66, %cst_47 [1] : vector<16x8xf32> to vector<16xf32>
    %68 = vector.shape_cast %67 : vector<16xf32> to vector<16x1xf32>
    %69 = tpu.reciprocal %68 {approx = true} : vector<16x1xf32> -> vector<16x1xf32>
    %70 = vector.broadcast %69 : vector<16x1xf32> to vector<16x8xf32>
    %71 = arith.mulf %66, %70 : vector<16x8xf32>
    %c3_48 = arith.constant 3 : index
    %c0_49 = arith.constant 0 : index
    %c0_50 = arith.constant 0 : index
    %72 = vector.load %arg10[%c3_48, %c0_49, %c0_50] : memref<4x8x32xf32, #tpu.memory_space<vmem>>, vector<1x8x32xf32>
    %73 = vector.shape_cast %72 : vector<1x8x32xf32> to vector<8x32xf32>
    %cst_51 = arith.constant dense<0.000000e+00> : vector<16x32xf32>
    %74 = tpu.matmul %71, %73, %cst_51 {dimension_numbers = #tpu.dot_dimension_numbers<[1], [0], [0], [1], [0, 0, 1, 1], [], []>} : vector<16x8xf32>, vector<8x32xf32>, vector<16x32xf32> -> vector<16x32xf32>
    %75 = tpu.concatenate %20, %38, %56, %74 in 1 : vector<16x32xf32>, vector<16x32xf32>, vector<16x32xf32>, vector<16x32xf32> -> vector<16x128xf32>
    %c0_52 = arith.constant 0 : index
    %c0_53 = arith.constant 0 : index
    %c0_54 = arith.constant 0 : index
    %c0_55 = arith.constant 0 : index
    %76 = vector.load %arg8[%c0_52, %c0_53, %c0_54, %c0_55] : memref<1x1x16x128xf32, #tpu.memory_space<vmem>>, vector<1x1x16x128xf32>
    %77 = vector.shape_cast %76 : vector<1x1x16x128xf32> to vector<16x128xf32>
    %78 = vector.shape_cast %75 : vector<16x128xf32> to vector<1x1x16x128xf32>
    tpu.vector_store %arg8[%c0_52, %c0_53, %c0_54, %c0_55], %78 {strides = array<i32>} : memref<1x1x16x128xf32, #tpu.memory_space<vmem>>, vector<1x1x16x128xf32>,
    return
  }
  func.func @transform_0(%arg0: i32, %arg1: i32, %arg2: i32) -> (i32, i32, i32, i32) {
    %c0_i32 = arith.constant 0 : i32
    %c0_i32_0 = arith.constant 0 : i32
    return %arg1, %arg0, %arg2, %c0_i32 : i32, i32, i32, i32
  }
  func.func @transform_1(%arg0: i32, %arg1: i32, %arg2: i32) -> (i32, i32, i32, i32) {
    %c0_i32 = arith.constant 0 : i32
    %c0_i32_0 = arith.constant 0 : i32
    %c0_i32_1 = arith.constant 0 : i32
    return %arg1, %arg0, %c0_i32, %c0_i32_0 : i32, i32, i32, i32
  }
  func.func @transform_2(%arg0: i32, %arg1: i32, %arg2: i32) -> (i32, i32, i32, i32) {
    %c0_i32 = arith.constant 0 : i32
    %c0_i32_0 = arith.constant 0 : i32
    %c0_i32_1 = arith.constant 0 : i32
    return %arg1, %arg0, %c0_i32, %c0_i32_0 : i32, i32, i32, i32
  }
  func.func @transform_3(%arg0: i32, %arg1: i32, %arg2: i32) -> (i32, i32, i32) {
    %c0_i32 = arith.constant 0 : i32
    %c0_i32_0 = arith.constant 0 : i32
    %c0_i32_1 = arith.constant 0 : i32
    return %arg1, %c0_i32, %c0_i32_0 : i32, i32, i32
  }
  func.func @transform_4(%arg0: i32, %arg1: i32, %arg2: i32) -> (i32, i32, i32) {
    %c0_i32 = arith.constant 0 : i32
    %c0_i32_0 = arith.constant 0 : i32
    %c0_i32_1 = arith.constant 0 : i32
    return %arg0, %c0_i32, %c0_i32_0 : i32, i32, i32
  }
  func.func @transform_5(%arg0: i32, %arg1: i32, %arg2: i32) -> (i32, i32, i32, i32) {
    %c0_i32 = arith.constant 0 : i32
    %c0_i32_0 = arith.constant 0 : i32
    return %arg1, %arg0, %arg2, %c0_i32 : i32, i32, i32, i32
  }
}

</mosaic_0001>

<llo_original>
// kernel: tpu_custom_call.1
$region0: #{tpu_custom_call.1}
  #allocation0 [shape = 'u32[]', space=smem, size = 0x4, offset = 0x4, fixed_abs, tag = 'smem constant byte address 0x4 - core index']
  #allocation1 [shape = 'u32[72,128]{1,0:T(1,128)}', space=vmem, size = 0x9000, scoped, tag = 'internal scratch']
  #allocation2 [shape = 'f32[4,8,32]{2,1,0:T(8,128)}', space=vmem, size = 0x4000, scoped, tag = 'scratch operand']
  #allocation3 [shape = 'f32[4,8,32]{2,1,0:T(8,128)}', space=vmem, size = 0x4000, scoped, tag = 'scratch operand']
  %s0 = inlined_call_operand.hbm [shape: f32[2,4,16,32], index: 0, kind: input, shape index: {}]
  %s1 = inlined_call_operand.hbm [shape: f32[2,4,16,32], index: 1, kind: input, shape index: {}]
  %s2 = inlined_call_operand.hbm [shape: f32[2,4,16,32], index: 2, kind: input, shape index: {}]
  %s3 = inlined_call_operand.vmem [shape: f32[2,1,16], index: 3, kind: input, shape index: {}]
  %s4 = inlined_call_operand.hbm [shape: f32[4,8,16], index: 4, kind: input, shape index: {}]
  %s5 = inlined_call_operand.hbm [shape: f32[2,1,16,128], index: 5, kind: output, shape index: {}]
  %s6 = sld [smem:[#allocation0]]
  $region73: #{tpu_custom_call.1} parent=0
    _
  %s8 = ssub.s32 1, %s6
  %s9 = scalar_select 0, %s8, %s6
  $region1: #{tpu_custom_call.1} parent=0
    #allocation4 [shape = 'u8[65536]{0}', space=vmem, size = 0x10000, scoped, tag = 'input window, operand 0']
    #allocation5 [shape = 's32[2]{0}', space=sflag, size = 0x8, scoped, tag = 'scoped memory for tpu_custom_call.1']
    #allocation6 [shape = 's32[2]{0}', space=sflag, size = 0x8, scoped, tag = 'scoped memory for tpu_custom_call.1']
    #allocation7 [shape = 'u8[65536]{0}', space=vmem, size = 0x10000, scoped, tag = 'input window, operand 1']
    #allocation8 [shape = 's32[2]{0}', space=sflag, size = 0x8, scoped, tag = 'scoped memory for tpu_custom_call.1']
    #allocation9 [shape = 'u8[65536]{0}', space=vmem, size = 0x10000, scoped, tag = 'input window, operand 2']
    #allocation10 [shape = 'u8[16384]{0}', space=vmem, size = 0x4000, scoped, tag = 'input window, operand 4, single buffered']
    #allocation11 [shape = 's32[1]{0}', space=sflag, size = 0x4, scoped, tag = 'scoped memory for tpu_custom_call.1']
    #allocation12 [shape = 'u8[16384]{0}', space=vmem, size = 0x4000, scoped, tag = 'output window, operand 0']
    %10 = vsyncpa [#allocation5], 0
    %s11 = scalar_lea.sflag [#allocation5], 1
    %12 = vsyncpa %s11, 0
    %13 = vsyncpa [#allocation8], 0
    %s14 = scalar_lea.sflag [#allocation8], 1
    %15 = vsyncpa %s14, 0
    %16 = vsyncpa [#allocation11], 0
    %17 = vsyncpa [#allocation6], 0
    %s18 = scalar_lea.sflag [#allocation6], 1
    %19 = vsyncpa %s18, 0
    loop: start=0, step=1, limit=4
    $region2: #{tpu_custom_call.1} parent=1 // loop_pre_header
      _
    $region3: #{tpu_custom_call.1} parent=1 // loop_header
      %s21 = sphi 0, %s25
      %p22 = scmp.ge.s32.totalorder %s21, 4
      %s28 = sphi 0, %s47
      %s29 = sphi 0, %s43
      %s30 = sphi 0, %s39
      %s31 = sphi 0, %s28
      %s32 = sphi 0, %s29
      %s33 = sphi 0, %s30
      %s34 = sphi 0, %s31
      %s35 = sphi 0, %s32
      %s36 = sphi 0, %s33
      %s54 = sphi 0, %s56
      %s57 = sphi 0, %s54
      %s58 = sphi 0, %s57
      %s74 = sphi 0, %s58
      %s82 = sphi 0, %s84
      %s85 = sphi 0, %s82
      %s86 = sphi 0, %s85
      %s102 = sphi 0, %s86
      %s110 = sphi 0, %s112
      %s113 = sphi 0, %s110
      %s114 = sphi 0, %s113
      %s130 = sphi 0, %s114
      %s136 = sphi 0, %s138
      %s139 = sphi 0, %s136
      %s140 = sphi 0, %s139
      %s156 = sphi 0, %s140
      %s162 = sphi 0, %s164
      %s165 = sphi 0, %s162
      %s166 = sphi 0, %s165
      %s182 = sphi 0, %s166
      %s192 = sphi 0, %s194
      %s195 = sphi 0, %s192
      %s196 = sphi 0, %s195
      %s212 = sphi 0, %s196
    $region4: #{tpu_custom_call.1} parent=1 // loop_header_branch
      %24 = sbr.rel (%p22) target = $region8
    $region5: #{tpu_custom_call.1} parent=1 // loop_body
      %s26 = ssub.s32 %s21, 1
      %s27 = ssub.s32 %s21, 2
      %s37 = sadd.s32 1, %s30
      %p38 = scmp.ge.s32.totalorder %s37, 1
      %s39 = scalar_select %p38, 0, %s37
      %s40 = sadd.s32 1, %s29
      %s41 = scalar_select %p38, %s40, %s29
      %p42 = scmp.ge.s32.totalorder %s41, 2
      %s43 = scalar_select %p42, 0, %s41
      %s44 = sadd.s32 1, %s28
      %s45 = scalar_select %p42, %s44, %s28
      %p46 = scmp.ge.s32.totalorder %s45, 1
      %s47 = scalar_select %p46, 0, %s45
      %s48 = ssub.s32 %s29, %s43
      %s49 = ssub.s32 %s28, %s47
      %s50 = sor.u32 %s48, %s49
      %s51 = ssub.s32 %s30, %s39
      %s52 = sor.u32 %s50, %s51
      %p53 = scmp.eq.s32.totalorder %s52, 0
      %s55 = sadd.s32 %s54, 1
      %s56 = scalar_select %p53, %s54, %s55
      %p59 = pneg %p53
      %p60 = scmp.eq.s32.totalorder %s21, 1
      %p61 = por %p59, %p60
      %p62 = scmp.ne.s32.totalorder %s54, %s57
      %p63 = scmp.eq.s32.totalorder %s21, 0
      %p64 = por %p62, %p63
      %p65 = scmp.ne.s32.totalorder %s54, %s57
      %p66 = scmp.eq.s32.totalorder %s26, 1
      %p67 = por %p65, %p66
      %p68 = scmp.ne.s32.totalorder %s57, %s58
      %p69 = scmp.eq.s32.totalorder %s26, 0
      %p70 = por %p68, %p69
      %p71 = scmp.ne.s32.totalorder %s57, %s58
      %p72 = scmp.eq.s32.totalorder %s27, 1
      %p73 = por %p71, %p72
      %p75 = scmp.ne.s32.totalorder %s58, %s74
      %p76 = scmp.eq.s32.totalorder %s27, 0
      %p77 = por %p75, %p76
      %s78 = ssub.s32 %s29, %s43
      %s79 = ssub.s32 %s28, %s47
      %s80 = sor.u32 %s78, %s79
      %p81 = scmp.eq.s32.totalorder %s80, 0
      %s83 = sadd.s32 %s82, 1
      %s84 = scalar_select %p81, %s82, %s83
      %p87 = pneg %p81
      %p88 = scmp.eq.s32.totalorder %s21, 1
      %p89 = por %p87, %p88
      %p90 = scmp.ne.s32.totalorder %s82, %s85
      %p91 = scmp.eq.s32.totalorder %s21, 0
      %p92 = por %p90, %p91
      %p93 = scmp.ne.s32.totalorder %s82, %s85
      %p94 = scmp.eq.s32.totalorder %s26, 1
      %p95 = por %p93, %p94
      %p96 = scmp.ne.s32.totalorder %s85, %s86
      %p97 = scmp.eq.s32.totalorder %s26, 0
      %p98 = por %p96, %p97
      %p99 = scmp.ne.s32.totalorder %s85, %s86
      %p100 = scmp.eq.s32.totalorder %s27, 1
      %p101 = por %p99, %p100
      %p103 = scmp.ne.s32.totalorder %s86, %s102
      %p104 = scmp.eq.s32.totalorder %s27, 0
      %p105 = por %p103, %p104
      %s106 = ssub.s32 %s29, %s43
      %s107 = ssub.s32 %s28, %s47
      %s108 = sor.u32 %s106, %s107
      %p109 = scmp.eq.s32.totalorder %s108, 0
      %s111 = sadd.s32 %s110, 1
      %s112 = scalar_select %p109, %s110, %s111
      %p115 = pneg %p109
      %p116 = scmp.eq.s32.totalorder %s21, 1
      %p117 = por %p115, %p116
      %p118 = scmp.ne.s32.totalorder %s110, %s113
      %p119 = scmp.eq.s32.totalorder %s21, 0
      %p120 = por %p118, %p119
      %p121 = scmp.ne.s32.totalorder %s110, %s113
      %p122 = scmp.eq.s32.totalorder %s26, 1
      %p123 = por %p121, %p122
      %p124 = scmp.ne.s32.totalorder %s113, %s114
      %p125 = scmp.eq.s32.totalorder %s26, 0
      %p126 = por %p124, %p125
      %p127 = scmp.ne.s32.totalorder %s113, %s114
      %p128 = scmp.eq.s32.totalorder %s27, 1
      %p129 = por %p127, %p128
      %p131 = scmp.ne.s32.totalorder %s114, %s130
      %p132 = scmp.eq.s32.totalorder %s27, 0
      %p133 = por %p131, %p132
      %s134 = ssub.s32 %s29, %s43
      %p135 = scmp.eq.s32.totalorder %s134, 0
      %s137 = sadd.s32 %s136, 1
      %s138 = scalar_select %p135, %s136, %s137
      %p141 = pneg %p135
      %p142 = scmp.eq.s32.totalorder %s21, 1
      %p143 = por %p141, %p142
      %p144 = scmp.ne.s32.totalorder %s136, %s139
      %p145 = scmp.eq.s32.totalorder %s21, 0
      %p146 = por %p144, %p145
      %p147 = scmp.ne.s32.totalorder %s136, %s139
      %p148 = scmp.eq.s32.totalorder %s26, 1
      %p149 = por %p147, %p148
      %p150 = scmp.ne.s32.totalorder %s139, %s140
      %p151 = scmp.eq.s32.totalorder %s26, 0
      %p152 = por %p150, %p151
      %p153 = scmp.ne.s32.totalorder %s139, %s140
      %p154 = scmp.eq.s32.totalorder %s27, 1
      %p155 = por %p153, %p154
      %p157 = scmp.ne.s32.totalorder %s140, %s156
      %p158 = scmp.eq.s32.totalorder %s27, 0
      %p159 = por %p157, %p158
      %s160 = ssub.s32 %s28, %s47
      %p161 = scmp.eq.s32.totalorder %s160, 0
      %s163 = sadd.s32 %s162, 1
      %s164 = scalar_select %p161, %s162, %s163
      %p167 = pneg %p161
      %p168 = scmp.eq.s32.totalorder %s21, 1
      %p169 = por %p167, %p168
      %p170 = scmp.ne.s32.totalorder %s162, %s165
      %p171 = scmp.eq.s32.totalorder %s21, 0
      %p172 = por %p170, %p171
      %p173 = scmp.ne.s32.totalorder %s162, %s165
      %p174 = scmp.eq.s32.totalorder %s26, 1
      %p175 = por %p173, %p174
      %p176 = scmp.ne.s32.totalorder %s165, %s166
      %p177 = scmp.eq.s32.totalorder %s26, 0
      %p178 = por %p176, %p177
      %p179 = scmp.ne.s32.totalorder %s165, %s166
      %p180 = scmp.eq.s32.totalorder %s27, 1
      %p181 = por %p179, %p180
      %p183 = scmp.ne.s32.totalorder %s166, %s182
      %p184 = scmp.eq.s32.totalorder %s27, 0
      %p185 = por %p183, %p184
      %s186 = ssub.s32 %s29, %s43
      %s187 = ssub.s32 %s28, %s47
      %s188 = sor.u32 %s186, %s187
      %s189 = ssub.s32 %s30, %s39
      %s190 = sor.u32 %s188, %s189
      %p191 = scmp.eq.s32.totalorder %s190, 0
      %s193 = sadd.s32 %s192, 1
      %s194 = scalar_select %p191, %s192, %s193
      %p197 = pneg %p191
      %p198 = scmp.eq.s32.totalorder %s21, 1
      %p199 = por %p197, %p198
      %p200 = scmp.ne.s32.totalorder %s192, %s195
      %p201 = scmp.eq.s32.totalorder %s21, 0
      %p202 = por %p200, %p201
      %p203 = scmp.ne.s32.totalorder %s192, %s195
      %p204 = scmp.eq.s32.totalorder %s26, 1
      %p205 = por %p203, %p204
      %p206 = scmp.ne.s32.totalorder %s195, %s196
      %p207 = scmp.eq.s32.totalorder %s26, 0
      %p208 = por %p206, %p207
      %p209 = scmp.ne.s32.totalorder %s195, %s196
      %p210 = scmp.eq.s32.totalorder %s27, 1
      %p211 = por %p209, %p210
      %p213 = scmp.ne.s32.totalorder %s196, %s212
      %p214 = scmp.eq.s32.totalorder %s27, 0
      %p215 = por %p213, %p214
      %p216 = scmp.le.s32.totalorder 1, %s21
      %p217 = scmp.lt.s32.totalorder %s21, 3
      %p218 = pnand %p216, %p217
      %p219 = pneg %p218
      // Predicated region
      $region9: #{tpu_custom_call.1} parent=5 // pred_check
        _
      $region10: #{tpu_custom_call.1} parent=5 // pred_check_branch
        %221 = sbr.rel (%p218) target = $region12
      $region11: #{tpu_custom_call.1} parent=5 // pred_region
        %s222 = ssub.s32 %s21, 1
        // Predicated region
        $region13: #{tpu_custom_call.1} parent=11 // pred_check
          %p223 = pneg %p178
        $region14: #{tpu_custom_call.1} parent=11 // pred_check_branch
          %225 = sbr.rel (%p223) target = $region16
        $region15: #{tpu_custom_call.1} parent=11 // pred_region
          %s226 = smul.u32 4, %s31
          %228 = vsyncadd [#allocation11], 0
          %s229 = smul.addr %s226, 8
          %s230 = scalar_lea.hbm %s4, %s229
          %s231 = sshll.u32 %s230, 4
          %s232 = int_to_ptr.hbm [resolvable:$true] %s231
          %s233 = sshll.u32 [#allocation10], 4
          %s234 = int_to_ptr.vmem [resolvable:$true] %s233
          %239 = dma.hbm_to_vmem [thread:$0]  %s232, 512, %s234, [#allocation11], 128, 128, 8
        $region16: #{tpu_custom_call.1} parent=11 // pred_fallthru
          _
      $region12: #{tpu_custom_call.1} parent=5 // pred_fallthru
        _
      %p240 = scmp.lt.s32.totalorder %s21, 2
      // Predicated region
      $region17: #{tpu_custom_call.1} parent=5 // pred_check
        %p241 = pneg %p240
      $region18: #{tpu_custom_call.1} parent=5 // pred_check_branch
        %243 = sbr.rel (%p241) target = $region20
      $region19: #{tpu_custom_call.1} parent=5 // pred_region
        // Predicated region
        $region21: #{tpu_custom_call.1} parent=19 // pred_check
          %p244 = pneg %p64
        $region22: #{tpu_custom_call.1} parent=19 // pred_check_branch
          %246 = sbr.rel (%p244) target = $region24
        $region23: #{tpu_custom_call.1} parent=19 // pred_region
          %s247 = sand.u32 %s54, 1
          %s248 = scalar_lea.sflag [#allocation5], %s247
          %s249 = sand.u32 %s54, 1
          %s250 = smul.addr %s249, 64
          %s251 = scalar_lea.vmem [#allocation4], %s250
          %s252 = smul.u32 4, %s28
          %s253 = smul.u32 2, %s30
          %255 = vsyncadd %s248, 0
          %s256 = smul.addr %s252, 2
          %s257 = sadd.s32 %s253, %s256
          %s258 = smul.addr %s29, 8
          %s259 = sadd.s32 %s257, %s258
          %s260 = smul.addr %s259, 8
          %s261 = scalar_lea.hbm %s0, %s260
          %s262 = sshll.u32 %s261, 4
          %s263 = int_to_ptr.hbm [resolvable:$true] %s262
          %s264 = sshll.u32 %s251, 4
          %s265 = int_to_ptr.vmem [resolvable:$true] %s264
          %270 = dma.hbm_to_vmem [thread:$0]  %s263, 1024, %s265, %s248, 128, 128, 8
        $region24: #{tpu_custom_call.1} parent=19 // pred_fallthru
          _
        // Predicated region
        $region25: #{tpu_custom_call.1} parent=19 // pred_check
          %p271 = pneg %p92
        $region26: #{tpu_custom_call.1} parent=19 // pred_check_branch
          %273 = sbr.rel (%p271) target = $region28
        $region27: #{tpu_custom_call.1} parent=19 // pred_region
          %s274 = sand.u32 %s21, 1
          %s275 = scalar_lea.sflag [#allocation8], %s274
          %s276 = sand.u32 %s82, 1
          %s277 = smul.addr %s276, 64
          %s278 = scalar_lea.vmem [#allocation7], %s277
          %s279 = smul.u32 4, %s28
          %281 = vsyncadd %s275, 0
          %s282 = smul.addr %s279, 2
          %s283 = smul.addr %s29, 8
          %s284 = sadd.s32 %s282, %s283
          %s285 = smul.addr %s284, 8
          %s286 = scalar_lea.hbm %s1, %s285
          %s287 = sshll.u32 %s286, 4
          %s288 = int_to_ptr.hbm [resolvable:$true] %s287
          %s289 = sshll.u32 %s278, 4
          %s290 = int_to_ptr.vmem [resolvable:$true] %s289
          %295 = dma.hbm_to_vmem [thread:$0]  %s288, 1024, %s290, %s275, 128, 128, 8
        $region28: #{tpu_custom_call.1} parent=19 // pred_fallthru
          _
        // Predicated region
        $region29: #{tpu_custom_call.1} parent=19 // pred_check
          %p296 = pneg %p120
        $region30: #{tpu_custom_call.1} parent=19 // pred_check_branch
          %298 = sbr.rel (%p296) target = $region32
        $region31: #{tpu_custom_call.1} parent=19 // pred_region
          %s299 = sand.u32 %s21, 1
          %s300 = scalar_lea.sflag [#allocation8], %s299
          %s301 = sand.u32 %s110, 1
          %s302 = smul.addr %s301, 64
          %s303 = scalar_lea.vmem [#allocation9], %s302
          %s304 = smul.u32 4, %s28
          %306 = vsyncadd %s300, 0
          %s307 = smul.addr %s304, 2
          %s308 = smul.addr %s29, 8
          %s309 = sadd.s32 %s307, %s308
          %s310 = smul.addr %s309, 8
          %s311 = scalar_lea.hbm %s2, %s310
          %s312 = sshll.u32 %s311, 4
          %s313 = int_to_ptr.hbm [resolvable:$true] %s312
          %s314 = sshll.u32 %s303, 4
          %s315 = int_to_ptr.vmem [resolvable:$true] %s314
          %320 = dma.hbm_to_vmem [thread:$0]  %s313, 1024, %s315, %s300, 128, 128, 8
        $region32: #{tpu_custom_call.1} parent=19 // pred_fallthru
          _
        // Predicated region
        $region33: #{tpu_custom_call.1} parent=19 // pred_check
          %p321 = pneg %p146
        $region34: #{tpu_custom_call.1} parent=19 // pred_check_branch
          %323 = sbr.rel (%p321) target = $region36
        $region35: #{tpu_custom_call.1} parent=19 // pred_region
          %p324 = scmp.lt.s32.totalorder %s29, 1
          %s325 = scalar_select %p324, %s29, 1
          %s326 = scalar_lea.vmem %s3, %s325
        $region36: #{tpu_custom_call.1} parent=19 // pred_fallthru
          _
      $region20: #{tpu_custom_call.1} parent=5 // pred_fallthru
        _
      %p327 = scmp.le.s32.totalorder 1, %s21
      %p328 = scmp.lt.s32.totalorder %s21, 3
      %p329 = pnand %p327, %p328
      %p330 = pneg %p329
      // Predicated region
      $region37: #{tpu_custom_call.1} parent=5 // pred_check
        _
      $region38: #{tpu_custom_call.1} parent=5 // pred_check_branch
        %332 = sbr.rel (%p329) target = $region40
      $region39: #{tpu_custom_call.1} parent=5 // pred_region
        %s333 = ssub.s32 %s21, 1
        %s334 = sand.u32 %s57, 1
        %s335 = scalar_lea.sflag [#allocation5], %s334
        %s336 = sand.u32 %s57, 1
        %s337 = smul.addr %s336, 64
        %s338 = scalar_lea.vmem [#allocation4], %s337
        // Predicated region
        $region41: #{tpu_custom_call.1} parent=39 // pred_check
          %p339 = pneg %p70
        $region42: #{tpu_custom_call.1} parent=39 // pred_check_branch
          %341 = sbr.rel (%p339) target = $region44
        $region43: #{tpu_custom_call.1} parent=39 // pred_region
          %343 = dma.done %s335, 1024
        $region44: #{tpu_custom_call.1} parent=39 // pred_fallthru
          _
        %s344 = sand.u32 %s26, 1
        %s345 = scalar_lea.sflag [#allocation8], %s344
        %s346 = sand.u32 %s85, 1
        %s347 = smul.addr %s346, 64
        %s348 = scalar_lea.vmem [#allocation7], %s347
        // Predicated region
        $region45: #{tpu_custom_call.1} parent=39 // pred_check
          %p349 = pneg %p98
        $region46: #{tpu_custom_call.1} parent=39 // pred_check_branch
          %351 = sbr.rel (%p349) target = $region48
        $region47: #{tpu_custom_call.1} parent=39 // pred_region
          %353 = dma.done %s345, 1024
        $region48: #{tpu_custom_call.1} parent=39 // pred_fallthru
          _
        %s354 = sand.u32 %s26, 1
        %s355 = scalar_lea.sflag [#allocation8], %s354
        %s356 = sand.u32 %s113, 1
        %s357 = smul.addr %s356, 64
        %s358 = scalar_lea.vmem [#allocation9], %s357
        // Predicated region
        $region49: #{tpu_custom_call.1} parent=39 // pred_check
          %p359 = pneg %p126
        $region50: #{tpu_custom_call.1} parent=39 // pred_check_branch
          %361 = sbr.rel (%p359) target = $region52
        $region51: #{tpu_custom_call.1} parent=39 // pred_region
          %363 = dma.done %s355, 1024
        $region52: #{tpu_custom_call.1} parent=39 // pred_fallthru
          _
        // Predicated region
        $region53: #{tpu_custom_call.1} parent=39 // pred_check
          %p364 = pneg %p178
        $region54: #{tpu_custom_call.1} parent=39 // pred_check_branch
          %366 = sbr.rel (%p364) target = $region56
        $region55: #{tpu_custom_call.1} parent=39 // pred_region
          %368 = dma.done [#allocation11], 512
        $region56: #{tpu_custom_call.1} parent=39 // pred_fallthru
          _
        %s369 = sand.u32 %s57, 1
        %s370 = scalar_lea.sflag [#allocation5], %s369
        %s371 = sand.u32 %s57, 1
        %s372 = smul.addr %s371, 64
        %s373 = scalar_lea.vmem [#allocation4], %s372
        %p374 = pneg %p70
        %p375 = pneg %p67
        %s376 = sand.u32 %s26, 1
        %s377 = scalar_lea.sflag [#allocation8], %s376
        %s378 = sand.u32 %s85, 1
        %s379 = smul.addr %s378, 64
        %s380 = scalar_lea.vmem [#allocation7], %s379
        %p381 = pneg %p98
        %p382 = pneg %p95
        %s383 = sand.u32 %s26, 1
        %s384 = scalar_lea.sflag [#allocation8], %s383
        %s385 = sand.u32 %s113, 1
        %s386 = smul.addr %s385, 64
        %s387 = scalar_lea.vmem [#allocation9], %s386
        %p388 = pneg %p126
        %p389 = pneg %p123
        %p390 = scmp.lt.s32.totalorder %s32, 1
        %s391 = scalar_select %p390, %s32, 1
        %s392 = scalar_lea.vmem %s3, %s391
        %p393 = pneg %p152
        %p394 = pneg %p149
        %p395 = pneg %p178
        %p396 = pneg %p175
        %p397 = pneg %p208
        %p398 = pneg %p205
        %s399 = sand.u32 %s195, 1
        %s400 = scalar_lea.sflag [#allocation6], %s399
        %s401 = sand.u32 %s195, 1
        %s402 = smul.addr %s401, 16
        %s403 = scalar_lea.vmem [#allocation12], %s402
        %s404 = smul.u32 4, %s31
        %s405 = smul.u32 2, %s33
        %s406 = smul.u32 4, %s31
        %s407 = smul.u32 4, %s31
        %p408 = scmp.lt.s32.totalorder %s32, 1
        %s409 = scalar_select %p408, %s32, 1
        %s410 = scalar_lea.vmem %s3, %s409
        %s411 = smul.u32 4, %s31
        %s412 = smul.u32 2, %s33
        %p413 = scmp.eq.s32.totalorder %s33, 0
        // Predicated region
        $region57: #{tpu_custom_call.1} parent=39 // pred_check
          %p414 = pneg %p413
        $region58: #{tpu_custom_call.1} parent=39 // pred_check_branch
          %416 = sbr.rel (%p414) target = $region60
        $region59: #{tpu_custom_call.1} parent=39 // pred_region
          %v417 = vld [vmem:[%s410] sm:$0x1]
          %v418 = vld [vmem:[#allocation10] sm:$0xff]
          %v420 = vperm.slane %v417, 0
          %v422 = vmul.f32 %v418, %v420
          %v423 = vld [vmem:[%s348] sm:$0xff]
          %v424 = vld [vmem:[%s348 + $0x8] sm:$0xff]
          %vm425 = vcmask 130048
          %v427 = vsel %vm425, %v422, 0
          %429 = vmatpush.msra.mxu0 0.0
          %430 = vmatpush.msra.mxu0 0.0
          %431 = vmatpush.msra.mxu0 0.0
          %432 = vmatpush.msra.mxu0 0.0
          %433 = vmatpush.msra.mxu0 0.0
          %434 = vmatpush.msra.mxu0 0.0
          %435 = vmatpush.msra.mxu0 0.0
          %436 = vmatpush.msra.mxu0 0.0
          %437 = vmatpush.msra.mxu0 0.0
          %438 = vmatpush.msra.mxu0 0.0
          %439 = vmatpush.msra.mxu0 0.0
          %440 = vmatpush.msra.mxu0 0.0
          %441 = vmatpush.msra.mxu0 0.0
          %442 = vmatpush.msra.mxu0 0.0
          %443 = vmatpush.msra.mxu0 %v424
          %444 = vmatpush.msra.mxu0 %v423
          %445 = vmatmul.f32.gmra.mxu0 %v427
          %v446 = vpop.f32.mrf.mxu0
          %v447 = vadd.f32 0.0, %v446
          %448 = vdwg.mxu0
          %v449 = vmul.f32 %v447, 0.17677669
          %v450 = vld [vmem:[%s358] sm:$0xff]
          %v451 = vld [vmem:[%s358 + $0x8] sm:$0xff]
          %452 = vmatpush.msra.mxu0 0.0
          %453 = vmatpush.msra.mxu0 0.0
          %454 = vmatpush.msra.mxu0 0.0
          %455 = vmatpush.msra.mxu0 0.0
          %456 = vmatpush.msra.mxu0 0.0
          %457 = vmatpush.msra.mxu0 0.0
          %458 = vmatpush.msra.mxu0 0.0
          %459 = vmatpush.msra.mxu0 0.0
          %460 = vmatpush.msra.mxu0 0.0
          %461 = vmatpush.msra.mxu0 0.0
          %462 = vmatpush.msra.mxu0 0.0
          %463 = vmatpush.msra.mxu0 0.0
          %464 = vmatpush.msra.mxu0 0.0
          %465 = vmatpush.msra.mxu0 0.0
          %466 = vmatpush.msra.mxu0 %v451
          %467 = vmatpush.msra.mxu0 %v450
          %468 = vmatmul.f32.gmra.mxu0 %v427
          %v469 = vpop.f32.mrf.mxu0
          %v470 = vadd.f32 0.0, %v469
          %471 = vdwg.mxu0
          %vm472 = vcmask 261120
          %473 = vst.msk [vmem:[#allocation2] sm:$0xff] %vm472, %v449
          %474 = vst.msk [vmem:[#allocation3] sm:$0xff] %vm472, %v470
          %s475 = scalar_lea.vmem [#allocation10], 8
          %v476 = vld [vmem:[%s475] sm:$0xff]
          %v477 = vmul.f32 %v476, %v420
          %s478 = scalar_lea.vmem %s348, 16 [#allocation7]
          %v479 = vld [vmem:[%s478] sm:$0xff]
          %v480 = vld [vmem:[%s478 + $0x8] sm:$0xff]
          %v482 = vsel %vm425, %v477, 0
          %484 = vmatpush.msra.mxu0 0.0
          %485 = vmatpush.msra.mxu0 0.0
          %486 = vmatpush.msra.mxu0 0.0
          %487 = vmatpush.msra.mxu0 0.0
          %488 = vmatpush.msra.mxu0 0.0
          %489 = vmatpush.msra.mxu0 0.0
          %490 = vmatpush.msra.mxu0 0.0
          %491 = vmatpush.msra.mxu0 0.0
          %492 = vmatpush.msra.mxu0 0.0
          %493 = vmatpush.msra.mxu0 0.0
          %494 = vmatpush.msra.mxu0 0.0
          %495 = vmatpush.msra.mxu0 0.0
          %496 = vmatpush.msra.mxu0 0.0
          %497 = vmatpush.msra.mxu0 0.0
          %498 = vmatpush.msra.mxu0 %v480
          %499 = vmatpush.msra.mxu0 %v479
          %500 = vmatmul.f32.gmra.mxu0 %v482
          %v501 = vpop.f32.mrf.mxu0
          %v502 = vadd.f32 0.0, %v501
          %503 = vdwg.mxu0
          %v504 = vmul.f32 %v502, 0.17677669
          %s505 = scalar_lea.vmem %s358, 16 [#allocation9]
          %v506 = vld [vmem:[%s505] sm:$0xff]
          %v507 = vld [vmem:[%s505 + $0x8] sm:$0xff]
          %508 = vmatpush.msra.mxu0 0.0
          %509 = vmatpush.msra.mxu0 0.0
          %510 = vmatpush.msra.mxu0 0.0
          %511 = vmatpush.msra.mxu0 0.0
          %512 = vmatpush.msra.mxu0 0.0
          %513 = vmatpush.msra.mxu0 0.0
          %514 = vmatpush.msra.mxu0 0.0
          %515 = vmatpush.msra.mxu0 0.0
          %516 = vmatpush.msra.mxu0 0.0
          %517 = vmatpush.msra.mxu0 0.0
          %518 = vmatpush.msra.mxu0 0.0
          %519 = vmatpush.msra.mxu0 0.0
          %520 = vmatpush.msra.mxu0 0.0
          %521 = vmatpush.msra.mxu0 0.0
          %522 = vmatpush.msra.mxu0 %v507
          %523 = vmatpush.msra.mxu0 %v506
          %524 = vmatmul.f32.gmra.mxu0 %v482
          %v525 = vpop.f32.mrf.mxu0
          %v526 = vadd.f32 0.0, %v525
          %527 = vdwg.mxu0
          %s528 = scalar_lea.vmem [#allocation2], 8
          %529 = vst.msk [vmem:[%s528] sm:$0xff] %vm472, %v504
          %s530 = scalar_lea.vmem [#allocation3], 8
          %531 = vst.msk [vmem:[%s530] sm:$0xff] %vm472, %v526
          %s532 = scalar_lea.vmem [#allocation10], 16
          %v533 = vld [vmem:[%s532] sm:$0xff]
          %v534 = vmul.f32 %v533, %v420
          %s535 = scalar_lea.vmem %s348, 32 [#allocation7]
          %v536 = vld [vmem:[%s535] sm:$0xff]
          %v537 = vld [vmem:[%s535 + $0x8] sm:$0xff]
          %v539 = vsel %vm425, %v534, 0
          %541 = vmatpush.msra.mxu0 0.0
          %542 = vmatpush.msra.mxu0 0.0
          %543 = vmatpush.msra.mxu0 0.0
          %544 = vmatpush.msra.mxu0 0.0
          %545 = vmatpush.msra.mxu0 0.0
          %546 = vmatpush.msra.mxu0 0.0
          %547 = vmatpush.msra.mxu0 0.0
          %548 = vmatpush.msra.mxu0 0.0
          %549 = vmatpush.msra.mxu0 0.0
          %550 = vmatpush.msra.mxu0 0.0
          %551 = vmatpush.msra.mxu0 0.0
          %552 = vmatpush.msra.mxu0 0.0
          %553 = vmatpush.msra.mxu0 0.0
          %554 = vmatpush.msra.mxu0 0.0
          %555 = vmatpush.msra.mxu0 %v537
          %556 = vmatpush.msra.mxu0 %v536
          %557 = vmatmul.f32.gmra.mxu0 %v539
          %v558 = vpop.f32.mrf.mxu0
          %v559 = vadd.f32 0.0, %v558
          %560 = vdwg.mxu0
          %v561 = vmul.f32 %v559, 0.17677669
          %s562 = scalar_lea.vmem %s358, 32 [#allocation9]
          %v563 = vld [vmem:[%s562] sm:$0xff]
          %v564 = vld [vmem:[%s562 + $0x8] sm:$0xff]
          %565 = vmatpush.msra.mxu0 0.0
          %566 = vmatpush.msra.mxu0 0.0
          %567 = vmatpush.msra.mxu0 0.0
          %568 = vmatpush.msra.mxu0 0.0
          %569 = vmatpush.msra.mxu0 0.0
          %570 = vmatpush.msra.mxu0 0.0
          %571 = vmatpush.msra.mxu0 0.0
          %572 = vmatpush.msra.mxu0 0.0
          %573 = vmatpush.msra.mxu0 0.0
          %574 = vmatpush.msra.mxu0 0.0
          %575 = vmatpush.msra.mxu0 0.0
          %576 = vmatpush.msra.mxu0 0.0
          %577 = vmatpush.msra.mxu0 0.0
          %578 = vmatpush.msra.mxu0 0.0
          %579 = vmatpush.msra.mxu0 %v564
          %580 = vmatpush.msra.mxu0 %v563
          %581 = vmatmul.f32.gmra.mxu0 %v539
          %v582 = vpop.f32.mrf.mxu0
          %v583 = vadd.f32 0.0, %v582
          %584 = vdwg.mxu0
          %s585 = scalar_lea.vmem [#allocation2], 16
          %586 = vst.msk [vmem:[%s585] sm:$0xff] %vm472, %v561
          %s587 = scalar_lea.vmem [#allocation3], 16
          %588 = vst.msk [vmem:[%s587] sm:$0xff] %vm472, %v583
          %s589 = scalar_lea.vmem [#allocation10], 24
          %v590 = vld [vmem:[%s589] sm:$0xff]
          %v591 = vmul.f32 %v590, %v420
          %s592 = scalar_lea.vmem %s348, 48 [#allocation7]
          %v593 = vld [vmem:[%s592] sm:$0xff]
          %v594 = vld [vmem:[%s592 + $0x8] sm:$0xff]
          %v596 = vsel %vm425, %v591, 0
          %598 = vmatpush.msra.mxu0 0.0
          %599 = vmatpush.msra.mxu0 0.0
          %600 = vmatpush.msra.mxu0 0.0
          %601 = vmatpush.msra.mxu0 0.0
          %602 = vmatpush.msra.mxu0 0.0
          %603 = vmatpush.msra.mxu0 0.0
          %604 = vmatpush.msra.mxu0 0.0
          %605 = vmatpush.msra.mxu0 0.0
          %606 = vmatpush.msra.mxu0 0.0
          %607 = vmatpush.msra.mxu0 0.0
          %608 = vmatpush.msra.mxu0 0.0
          %609 = vmatpush.msra.mxu0 0.0
          %610 = vmatpush.msra.mxu0 0.0
          %611 = vmatpush.msra.mxu0 0.0
          %612 = vmatpush.msra.mxu0 %v594
          %613 = vmatpush.msra.mxu0 %v593
          %614 = vmatmul.f32.gmra.mxu0 %v596
          %v615 = vpop.f32.mrf.mxu0
          %v616 = vadd.f32 0.0, %v615
          %617 = vdwg.mxu0
          %v618 = vmul.f32 %v616, 0.17677669
          %s619 = scalar_lea.vmem %s358, 48 [#allocation9]
          %v620 = vld [vmem:[%s619] sm:$0xff]
          %v621 = vld [vmem:[%s619 + $0x8] sm:$0xff]
          %622 = vmatpush.msra.mxu0 0.0
          %623 = vmatpush.msra.mxu0 0.0
          %624 = vmatpush.msra.mxu0 0.0
          %625 = vmatpush.msra.mxu0 0.0
          %626 = vmatpush.msra.mxu0 0.0
          %627 = vmatpush.msra.mxu0 0.0
          %628 = vmatpush.msra.mxu0 0.0
          %629 = vmatpush.msra.mxu0 0.0
          %630 = vmatpush.msra.mxu0 0.0
          %631 = vmatpush.msra.mxu0 0.0
          %632 = vmatpush.msra.mxu0 0.0
          %633 = vmatpush.msra.mxu0 0.0
          %634 = vmatpush.msra.mxu0 0.0
          %635 = vmatpush.msra.mxu0 0.0
          %636 = vmatpush.msra.mxu0 %v621
          %637 = vmatpush.msra.mxu0 %v620
          %638 = vmatmul.f32.gmra.mxu0 %v596
          %v639 = vpop.f32.mrf.mxu0
          %v640 = vadd.f32 0.0, %v639
          %641 = vdwg.mxu0
          %s642 = scalar_lea.vmem [#allocation2], 24
          %643 = vst.msk [vmem:[%s642] sm:$0xff] %vm472, %v618
          %s644 = scalar_lea.vmem [#allocation3], 24
          %645 = vst.msk [vmem:[%s644] sm:$0xff] %vm472, %v640
        $region60: #{tpu_custom_call.1} parent=39 // pred_fallthru
          _
        %v646 = vld [vmem:[%s338] sm:$0xff]
        %v647 = vld [vmem:[%s338 + $0x8] sm:$0xff]
        %v648 = vld [vmem:[#allocation2] sm:$0xff]
        %vm649 = vcmask 261120
        %v651 = vsel %vm649, %v646, 0
        %v654 = vsel %vm649, %v647, 0
        %v657 = vsel %vm649, %v648, 0
        %659 = vmatpush.xpose.msra.mxu0 0.0
        %660 = vmatpush.xpose.msra.mxu0 0.0
        %661 = vmatpush.xpose.msra.mxu0 0.0
        %662 = vmatpush.xpose.msra.mxu0 0.0
        %663 = vmatpush.xpose.msra.mxu0 0.0
        %664 = vmatpush.xpose.msra.mxu0 0.0
        %665 = vmatpush.xpose.msra.mxu0 0.0
        %666 = vmatpush.xpose.msra.mxu0 0.0
        %667 = vmatpush.xpose.msra.mxu0 0.0
        %668 = vmatpush.xpose.msra.mxu0 0.0
        %669 = vmatpush.xpose.msra.mxu0 0.0
        %670 = vmatpush.xpose.msra.mxu0 0.0
        %671 = vmatpush.xpose.msra.mxu0 0.0
        %672 = vmatpush.xpose.msra.mxu0 0.0
        %673 = vmatpush.xpose.msra.mxu0 0.0
        %674 = vmatpush.xpose.msra.mxu0 %v657
        %675 = vmatmul.f32.gmra.mxu0 %v651
        %v676 = vpop.f32.mrf.mxu0
        %v677 = vadd.f32 0.0, %v676
        %678 = vmatmul.f32.gmra.mxu0 %v654
        %v679 = vpop.f32.mrf.mxu0
        %v680 = vadd.f32 0.0, %v679
        %681 = vdwg.mxu0
        %vm682 = vcmask 64512
        %v683 = vsel %vm682, %v677, -inf
        %684 = vmax.xlane.f32.xlu0 %v683
        %v685 = vpop.xlane.xlu0 %684
        %v686 = vsel %vm682, %v680, -inf
        %687 = vmax.xlane.f32.xlu0 %v686
        %v688 = vpop.xlane.xlu0 %687
        %v689 = vsub.f32 %v677, %v685
        %v690 = vsub.f32 %v680, %v688
        %v691 = vmul.f32 %v689, 1.442695
        %v692 = vpow.pop %v691
        %v693 = vmul.f32 %v690, 1.442695
        %v694 = vpow.pop %v693
        %v695 = vsel %vm682, %v692, 0.0
        %696 = vadd.xlane.f32.xlu0 %v695
        %v697 = vpop.xlane.xlu0 %696
        %v698 = vsel %vm682, %v694, 0.0
        %699 = vadd.xlane.f32.xlu0 %v698
        %v700 = vpop.xlane.xlu0 %699
        %v701 = vrcp.pop %v697
        %v702 = vrcp.pop %v700
        %v703 = vmul.f32 %v692, %v701
        %v704 = vmul.f32 %v694, %v702
        %v705 = vld [vmem:[#allocation3] sm:$0xff]
        %v707 = vsel %vm682, %v703, 0
        %v710 = vsel %vm682, %v704, 0
        %712 = vmatpush.msra.mxu0 0.0
        %713 = vmatpush.msra.mxu0 0.0
        %714 = vmatpush.msra.mxu0 0.0
        %715 = vmatpush.msra.mxu0 0.0
        %716 = vmatpush.msra.mxu0 0.0
        %717 = vmatpush.msra.mxu0 0.0
        %718 = vmatpush.msra.mxu0 0.0
        %719 = vmatpush.msra.mxu0 0.0
        %720 = vmatpush.msra.mxu0 0.0
        %721 = vmatpush.msra.mxu0 0.0
        %722 = vmatpush.msra.mxu0 0.0
        %723 = vmatpush.msra.mxu0 0.0
        %724 = vmatpush.msra.mxu0 0.0
        %725 = vmatpush.msra.mxu0 0.0
        %726 = vmatpush.msra.mxu0 0.0
        %727 = vmatpush.msra.mxu0 %v705
        %728 = vmatmul.f32.gmra.mxu0 %v707
        %v729 = vpop.f32.mrf.mxu0
        %v730 = vadd.f32 0.0, %v729
        %731 = vmatmul.f32.gmra.mxu0 %v710
        %v732 = vpop.f32.mrf.mxu0
        %v733 = vadd.f32 0.0, %v732
        %734 = vdwg.mxu0
        %s735 = scalar_lea.vmem %s338, 16 [#allocation4]
        %v736 = vld [vmem:[%s735] sm:$0xff]
        %v737 = vld [vmem:[%s735 + $0x8] sm:$0xff]
        %s738 = scalar_lea.vmem [#allocation2], 8
        %v739 = vld [vmem:[%s738] sm:$0xff]
        %v741 = vsel %vm649, %v736, 0
        %v744 = vsel %vm649, %v737, 0
        %v747 = vsel %vm649, %v739, 0
        %749 = vmatpush.xpose.msra.mxu0 0.0
        %750 = vmatpush.xpose.msra.mxu0 0.0
        %751 = vmatpush.xpose.msra.mxu0 0.0
        %752 = vmatpush.xpose.msra.mxu0 0.0
        %753 = vmatpush.xpose.msra.mxu0 0.0
        %754 = vmatpush.xpose.msra.mxu0 0.0
        %755 = vmatpush.xpose.msra.mxu0 0.0
        %756 = vmatpush.xpose.msra.mxu0 0.0
        %757 = vmatpush.xpose.msra.mxu0 0.0
        %758 = vmatpush.xpose.msra.mxu0 0.0
        %759 = vmatpush.xpose.msra.mxu0 0.0
        %760 = vmatpush.xpose.msra.mxu0 0.0
        %761 = vmatpush.xpose.msra.mxu0 0.0
        %762 = vmatpush.xpose.msra.mxu0 0.0
        %763 = vmatpush.xpose.msra.mxu0 0.0
        %764 = vmatpush.xpose.msra.mxu0 %v747
        %765 = vmatmul.f32.gmra.mxu0 %v741
        %v766 = vpop.f32.mrf.mxu0
        %v767 = vadd.f32 0.0, %v766
        %768 = vmatmul.f32.gmra.mxu0 %v744
        %v769 = vpop.f32.mrf.mxu0
        %v770 = vadd.f32 0.0, %v769
        %771 = vdwg.mxu0
        %v772 = vsel %vm682, %v767, -inf
        %773 = vmax.xlane.f32.xlu0 %v772
        %v774 = vpop.xlane.xlu0 %773
        %v775 = vsel %vm682, %v770, -inf
        %776 = vmax.xlane.f32.xlu0 %v775
        %v777 = vpop.xlane.xlu0 %776
        %v778 = vsub.f32 %v767, %v774
        %v779 = vsub.f32 %v770, %v777
        %v780 = vmul.f32 %v778, 1.442695
        %v781 = vpow.pop %v780
        %v782 = vmul.f32 %v779, 1.442695
        %v783 = vpow.pop %v782
        %v784 = vsel %vm682, %v781, 0.0
        %785 = vadd.xlane.f32.xlu0 %v784
        %v786 = vpop.xlane.xlu0 %785
        %v787 = vsel %vm682, %v783, 0.0
        %788 = vadd.xlane.f32.xlu0 %v787
        %v789 = vpop.xlane.xlu0 %788
        %v790 = vrcp.pop %v786
        %v791 = vrcp.pop %v789
        %v792 = vmul.f32 %v781, %v790
        %v793 = vmul.f32 %v783, %v791
        %s794 = scalar_lea.vmem [#allocation3], 8
        %v795 = vld [vmem:[%s794] sm:$0xff]
        %v797 = vsel %vm682, %v792, 0
        %v800 = vsel %vm682, %v793, 0
        %802 = vmatpush.msra.mxu0 0.0
        %803 = vmatpush.msra.mxu0 0.0
        %804 = vmatpush.msra.mxu0 0.0
        %805 = vmatpush.msra.mxu0 0.0
        %806 = vmatpush.msra.mxu0 0.0
        %807 = vmatpush.msra.mxu0 0.0
        %808 = vmatpush.msra.mxu0 0.0
        %809 = vmatpush.msra.mxu0 0.0
        %810 = vmatpush.msra.mxu0 0.0
        %811 = vmatpush.msra.mxu0 0.0
        %812 = vmatpush.msra.mxu0 0.0
        %813 = vmatpush.msra.mxu0 0.0
        %814 = vmatpush.msra.mxu0 0.0
        %815 = vmatpush.msra.mxu0 0.0
        %816 = vmatpush.msra.mxu0 0.0
        %817 = vmatpush.msra.mxu0 %v795
        %818 = vmatmul.f32.gmra.mxu0 %v797
        %v819 = vpop.f32.mrf.mxu0
        %v820 = vadd.f32 0.0, %v819
        %821 = vmatmul.f32.gmra.mxu0 %v800
        %v822 = vpop.f32.mrf.mxu0
        %v823 = vadd.f32 0.0, %v822
        %824 = vdwg.mxu0
        %s825 = scalar_lea.vmem %s338, 32 [#allocation4]
        %v826 = vld [vmem:[%s825] sm:$0xff]
        %v827 = vld [vmem:[%s825 + $0x8] sm:$0xff]
        %s828 = scalar_lea.vmem [#allocation2], 16
        %v829 = vld [vmem:[%s828] sm:$0xff]
        %v831 = vsel %vm649, %v826, 0
        %v834 = vsel %vm649, %v827, 0
        %v837 = vsel %vm649, %v829, 0
        %839 = vmatpush.xpose.msra.mxu0 0.0
        %840 = vmatpush.xpose.msra.mxu0 0.0
        %841 = vmatpush.xpose.msra.mxu0 0.0
        %842 = vmatpush.xpose.msra.mxu0 0.0
        %843 = vmatpush.xpose.msra.mxu0 0.0
        %844 = vmatpush.xpose.msra.mxu0 0.0
        %845 = vmatpush.xpose.msra.mxu0 0.0
        %846 = vmatpush.xpose.msra.mxu0 0.0
        %847 = vmatpush.xpose.msra.mxu0 0.0
        %848 = vmatpush.xpose.msra.mxu0 0.0
        %849 = vmatpush.xpose.msra.mxu0 0.0
        %850 = vmatpush.xpose.msra.mxu0 0.0
        %851 = vmatpush.xpose.msra.mxu0 0.0
        %852 = vmatpush.xpose.msra.mxu0 0.0
        %853 = vmatpush.xpose.msra.mxu0 0.0
        %854 = vmatpush.xpose.msra.mxu0 %v837
        %855 = vmatmul.f32.gmra.mxu0 %v831
        %v856 = vpop.f32.mrf.mxu0
        %v857 = vadd.f32 0.0, %v856
        %858 = vmatmul.f32.gmra.mxu0 %v834
        %v859 = vpop.f32.mrf.mxu0
        %v860 = vadd.f32 0.0, %v859
        %861 = vdwg.mxu0
        %v862 = vsel %vm682, %v857, -inf
        %863 = vmax.xlane.f32.xlu0 %v862
        %v864 = vpop.xlane.xlu0 %863
        %v865 = vsel %vm682, %v860, -inf
        %866 = vmax.xlane.f32.xlu0 %v865
        %v867 = vpop.xlane.xlu0 %866
        %v868 = vsub.f32 %v857, %v864
        %v869 = vsub.f32 %v860, %v867
        %v870 = vmul.f32 %v868, 1.442695
        %v871 = vpow.pop %v870
        %v872 = vmul.f32 %v869, 1.442695
        %v873 = vpow.pop %v872
        %v874 = vsel %vm682, %v871, 0.0
        %875 = vadd.xlane.f32.xlu0 %v874
        %v876 = vpop.xlane.xlu0 %875
        %v877 = vsel %vm682, %v873, 0.0
        %878 = vadd.xlane.f32.xlu0 %v877
        %v879 = vpop.xlane.xlu0 %878
        %v880 = vrcp.pop %v876
        %v881 = vrcp.pop %v879
        %v882 = vmul.f32 %v871, %v880
        %v883 = vmul.f32 %v873, %v881
        %s884 = scalar_lea.vmem [#allocation3], 16
        %v885 = vld [vmem:[%s884] sm:$0xff]
        %v887 = vsel %vm682, %v882, 0
        %v890 = vsel %vm682, %v883, 0
        %892 = vmatpush.msra.mxu0 0.0
        %893 = vmatpush.msra.mxu0 0.0
        %894 = vmatpush.msra.mxu0 0.0
        %895 = vmatpush.msra.mxu0 0.0
        %896 = vmatpush.msra.mxu0 0.0
        %897 = vmatpush.msra.mxu0 0.0
        %898 = vmatpush.msra.mxu0 0.0
        %899 = vmatpush.msra.mxu0 0.0
        %900 = vmatpush.msra.mxu0 0.0
        %901 = vmatpush.msra.mxu0 0.0
        %902 = vmatpush.msra.mxu0 0.0
        %903 = vmatpush.msra.mxu0 0.0
        %904 = vmatpush.msra.mxu0 0.0
        %905 = vmatpush.msra.mxu0 0.0
        %906 = vmatpush.msra.mxu0 0.0
        %907 = vmatpush.msra.mxu0 %v885
        %908 = vmatmul.f32.gmra.mxu0 %v887
        %v909 = vpop.f32.mrf.mxu0
        %v910 = vadd.f32 0.0, %v909
        %911 = vmatmul.f32.gmra.mxu0 %v890
        %v912 = vpop.f32.mrf.mxu0
        %v913 = vadd.f32 0.0, %v912
        %914 = vdwg.mxu0
        %s915 = scalar_lea.vmem %s338, 48 [#allocation4]
        %v916 = vld [vmem:[%s915] sm:$0xff]
        %v917 = vld [vmem:[%s915 + $0x8] sm:$0xff]
        %s918 = scalar_lea.vmem [#allocation2], 24
        %v919 = vld [vmem:[%s918] sm:$0xff]
        %v921 = vsel %vm649, %v916, 0
        %v924 = vsel %vm649, %v917, 0
        %v927 = vsel %vm649, %v919, 0
        %929 = vmatpush.xpose.msra.mxu0 0.0
        %930 = vmatpush.xpose.msra.mxu0 0.0
        %931 = vmatpush.xpose.msra.mxu0 0.0
        %932 = vmatpush.xpose.msra.mxu0 0.0
        %933 = vmatpush.xpose.msra.mxu0 0.0
        %934 = vmatpush.xpose.msra.mxu0 0.0
        %935 = vmatpush.xpose.msra.mxu0 0.0
        %936 = vmatpush.xpose.msra.mxu0 0.0
        %937 = vmatpush.xpose.msra.mxu0 0.0
        %938 = vmatpush.xpose.msra.mxu0 0.0
        %939 = vmatpush.xpose.msra.mxu0 0.0
        %940 = vmatpush.xpose.msra.mxu0 0.0
        %941 = vmatpush.xpose.msra.mxu0 0.0
        %942 = vmatpush.xpose.msra.mxu0 0.0
        %943 = vmatpush.xpose.msra.mxu0 0.0
        %944 = vmatpush.xpose.msra.mxu0 %v927
        %945 = vmatmul.f32.gmra.mxu0 %v921
        %v946 = vpop.f32.mrf.mxu0
        %v947 = vadd.f32 0.0, %v946
        %948 = vmatmul.f32.gmra.mxu0 %v924
        %v949 = vpop.f32.mrf.mxu0
        %v950 = vadd.f32 0.0, %v949
        %951 = vdwg.mxu0
        %v952 = vsel %vm682, %v947, -inf
        %953 = vmax.xlane.f32.xlu0 %v952
        %v954 = vpop.xlane.xlu0 %953
        %v955 = vsel %vm682, %v950, -inf
        %956 = vmax.xlane.f32.xlu0 %v955
        %v957 = vpop.xlane.xlu0 %956
        %v958 = vsub.f32 %v947, %v954
        %v959 = vsub.f32 %v950, %v957
        %v960 = vmul.f32 %v958, 1.442695
        %v961 = vpow.pop %v960
        %v962 = vmul.f32 %v959, 1.442695
        %v963 = vpow.pop %v962
        %v964 = vsel %vm682, %v961, 0.0
        %965 = vadd.xlane.f32.xlu0 %v964
        %v966 = vpop.xlane.xlu0 %965
        %v967 = vsel %vm682, %v963, 0.0
        %968 = vadd.xlane.f32.xlu0 %v967
        %v969 = vpop.xlane.xlu0 %968
        %v970 = vrcp.pop %v966
        %v971 = vrcp.pop %v969
        %v972 = vmul.f32 %v961, %v970
        %v973 = vmul.f32 %v963, %v971
        %s974 = scalar_lea.vmem [#allocation3], 24
        %v975 = vld [vmem:[%s974] sm:$0xff]
        %v977 = vsel %vm682, %v972, 0
        %v980 = vsel %vm682, %v973, 0
        %982 = vmatpush.msra.mxu0 0.0
        %983 = vmatpush.msra.mxu0 0.0
        %984 = vmatpush.msra.mxu0 0.0
        %985 = vmatpush.msra.mxu0 0.0
        %986 = vmatpush.msra.mxu0 0.0
        %987 = vmatpush.msra.mxu0 0.0
        %988 = vmatpush.msra.mxu0 0.0
        %989 = vmatpush.msra.mxu0 0.0
        %990 = vmatpush.msra.mxu0 0.0
        %991 = vmatpush.msra.mxu0 0.0
        %992 = vmatpush.msra.mxu0 0.0
        %993 = vmatpush.msra.mxu0 0.0
        %994 = vmatpush.msra.mxu0 0.0
        %995 = vmatpush.msra.mxu0 0.0
        %996 = vmatpush.msra.mxu0 0.0
        %997 = vmatpush.msra.mxu0 %v975
        %998 = vmatmul.f32.gmra.mxu0 %v977
        %v999 = vpop.f32.mrf.mxu0
        %v1000 = vadd.f32 0.0, %v999
        %1001 = vmatmul.f32.gmra.mxu0 %v980
        %v1002 = vpop.f32.mrf.mxu0
        %v1003 = vadd.f32 0.0, %v1002
        %1004 = vdwg.mxu0
        %1007 = vrot.lane.b32.xlu0 %v820, 32
        %v1008 = vpop.permute.xlu0 %1007
        %1009 = vrot.lane.b32.xlu0 %v823, 32
        %v1010 = vpop.permute.xlu0 %1009
        %1015 = vrot.lane.b32.xlu0 %v910, 64
        %v1016 = vpop.permute.xlu0 %1015
        %1017 = vrot.lane.b32.xlu0 %v913, 64
        %v1018 = vpop.permute.xlu0 %1017
        %1023 = vrot.lane.b32.xlu0 %v1000, 96
        %v1024 = vpop.permute.xlu0 %1023
        %1025 = vrot.lane.b32.xlu0 %v1003, 96
        %v1026 = vpop.permute.xlu0 %1025
        %v1029 = vsel %vm649, %v730, %v1008
        %v1030 = vsel %vm649, %v733, %v1010
        %vm1031 = vcmask 523264
        %v1032 = vsel %vm1031, %v1029, %v1016
        %v1033 = vsel %vm1031, %v1030, %v1018
        %vm1034 = vcmask 785408
        %v1035 = vsel %vm1034, %v1032, %v1024
        %v1036 = vsel %vm1034, %v1033, %v1026
        %1037 = vst [vmem:[%s403] sm:$0xff] %v1035
        %1038 = vst [vmem:[%s403 + $0x8] sm:$0xff] %v1036
        %s1039 = sand.u32 %s195, 1
        %s1040 = scalar_lea.sflag [#allocation6], %s1039
        %s1041 = sand.u32 %s195, 1
        %s1042 = smul.addr %s1041, 16
        %s1043 = scalar_lea.vmem [#allocation12], %s1042
        // Predicated region
        $region61: #{tpu_custom_call.1} parent=39 // pred_check
          %p1044 = pneg %p205
        $region62: #{tpu_custom_call.1} parent=39 // pred_check_branch
          %1046 = sbr.rel (%p1044) target = $region64
        $region63: #{tpu_custom_call.1} parent=39 // pred_region
          %s1047 = smul.u32 2, %s33
          %1049 = vsyncadd %s1040, 0
          %s1050 = smul.addr %s31, 2
          %s1051 = sadd.s32 %s1047, %s1050
          %s1052 = smul.addr %s32, 2
          %s1053 = sadd.s32 %s1051, %s1052
          %s1054 = smul.addr %s1053, 8
          %s1055 = scalar_lea.hbm %s5, %s1054
          %s1056 = sshll.u32 %s1043, 4
          %s1057 = int_to_ptr.vmem [resolvable:$true] %s1056
          %s1058 = sshll.u32 %s1055, 4
          %s1059 = int_to_ptr.hbm [resolvable:$true] %s1058
          %1064 = dma.vmem_to_hbm [thread:$0]  %s1057, 256, %s1059, %s1040, 128, 128, 8
        $region64: #{tpu_custom_call.1} parent=39 // pred_fallthru
          _
      $region40: #{tpu_custom_call.1} parent=5 // pred_fallthru
        _
      %p1065 = scmp.le.s32.totalorder 2, %s21
      // Predicated region
      $region65: #{tpu_custom_call.1} parent=5 // pred_check
        %p1066 = pneg %p1065
      $region66: #{tpu_custom_call.1} parent=5 // pred_check_branch
        %1068 = sbr.rel (%p1066) target = $region68
      $region67: #{tpu_custom_call.1} parent=5 // pred_region
        %s1069 = ssub.s32 %s21, 2
        // Predicated region
        $region69: #{tpu_custom_call.1} parent=67 // pred_check
          %p1070 = pneg %p211
        $region70: #{tpu_custom_call.1} parent=67 // pred_check_branch
          %1072 = sbr.rel (%p1070) target = $region72
        $region71: #{tpu_custom_call.1} parent=67 // pred_region
          %s1073 = sand.u32 %s196, 1
          %s1074 = scalar_lea.sflag [#allocation6], %s1073
          %s1075 = sand.u32 %s196, 1
          %s1076 = smul.addr %s1075, 16
          %s1077 = scalar_lea.vmem [#allocation12], %s1076
          %1079 = dma.done %s1074, 256
        $region72: #{tpu_custom_call.1} parent=67 // pred_fallthru
          _
      $region68: #{tpu_custom_call.1} parent=5 // pred_fallthru
        _
    $region6: #{tpu_custom_call.1} parent=1 // loop_footer
      %s25 = sadd.s32 1, %s21
    $region7: #{tpu_custom_call.1} parent=1 // loop_footer_branch
      %20 = sbr.rel target = $region3
    $region8: #{tpu_custom_call.1} parent=1 // loop_exit
      _
    %1080 = vsyncpa [#allocation5], 1
    %s1081 = scalar_lea.sflag [#allocation5], 1
    %1082 = vsyncpa %s1081, 1
    %1083 = vsyncpa [#allocation8], 1
    %s1084 = scalar_lea.sflag [#allocation8], 1
    %1085 = vsyncpa %s1084, 1
    %1086 = vsyncpa [#allocation11], 1
    %1087 = vsyncpa [#allocation6], 1
    %s1088 = scalar_lea.sflag [#allocation6], 1
    %1089 = vsyncpa %s1088, 1

</llo_original>
